<compile_context>
chip_gen: v5e
topology: v5e:2x2
jax: 0.10.0
libtpu: 0.0.40
codegen_flags: <defaults>
</compile_context>

<pallas_src>
import functools

import jax
import jax.numpy as jnp
from jax import lax
from jax.experimental import pallas as pl
from jax.experimental.pallas import tpu as pltpu

ALPHA = 1.0
BETA = 1.0
LN_EPS = 1e-5
ATTN_EPS = 1e-8
MXU_DTYPE = jnp.bfloat16   # operand dtype for the streamed MXU matmuls (f32 accum)


def _layernorm(x, gamma, beta):
    mu = jnp.mean(x, axis=-1, keepdims=True)
    var = jnp.mean((x - mu) ** 2, axis=-1, keepdims=True)
    return (x - mu) * lax.rsqrt(var + LN_EPS) * gamma + beta


def _dg(a, b, contract):
    """dot_general with explicit contracting dims (no batch dims), f32 accum."""
    return lax.dot_general(a, b, dimension_numbers=(contract, ((), ())),
                           preferred_element_type=jnp.float32)


def _graph_corrector_kernel(
    slots_ref, x_ref, qk_ref,
    gin_ref, bin_ref, wvu_ref, wg_ref, bg_ref,
    slots_out_ref, attn_out_ref,
    acc_sc, lsum_sc,
    *, n_tokens, tile_n, mask_tail,
):
    n = pl.program_id(1)
    n_last = pl.num_programs(1) - 1
    d = slots_ref.shape[-1]
    scale = 1.0 / (float(d) ** 0.5)

    # ---- per-batch accumulator init -----------------------------------------
    @pl.when(n == 0)
    def _():
        acc_sc[...] = jnp.zeros_like(acc_sc)
        lsum_sc[...] = jnp.zeros_like(lsum_sc)

    # ---- streamed slot attention over this N tile ---------------------------
    x = x_ref[0].astype(jnp.float32)                                   # [tN, D]
    x_ln = _layernorm(x, gin_ref[...], bin_ref[...])
    x_mxu = x_ln.astype(MXU_DTYPE)                                     # cast once

    # logits = q @ k^T == (q @ Wk^T) @ x_ln^T ; qk precomputed in the wrapper.
    logits = _dg(qk_ref[0], x_mxu, ((1,), (1,)))                       # [S, tN]

    # softmax over the *slot* axis (per location, independent of N tiling);
    # denominator >= 1, approx reciprocal rides the EUP slot.
    m = jnp.max(logits, axis=0, keepdims=True)
    e = jnp.exp(logits - m)
    attn = e * pl.reciprocal(jnp.sum(e, axis=0, keepdims=True), approx=True)

    if mask_tail:
        # zero out padded token columns so they neither contaminate the
        # per-slot normalization nor the streamed accumulators.
        col = n * tile_n + lax.broadcasted_iota(jnp.int32, (1, tile_n), 1)
        attn = jnp.where(col < n_tokens, attn, 0.0)

    attn_out_ref[0] = attn.astype(attn_out_ref.dtype)

    # streamed weighted-mean accumulators; W_vu and the per-slot normalization
    # are applied once in the epilogue:  feats = slots + ((acc * inv) @ W_vu).
    acc_sc[...] += _dg(attn.astype(MXU_DTYPE), x_mxu, ((1,), (0,)))    # [S, D]
    lsum_sc[...] += jnp.sum(attn, axis=-1, keepdims=True)              # [S, 1]

    # ---- per-batch epilogue: slot update, graph construction, GCN, mix -----
    @pl.when(n == n_last)
    def _():
        slots = slots_ref[0].astype(jnp.float32)                       # [S, D]
        inv_l = 1.0 / (lsum_sc[...] + ATTN_EPS)                        # exact (once per batch)
        # residual linear slot update (Wv and Wu folded into W_vu)
        feats = slots + _dg(acc_sc[...] * inv_l, wvu_ref[...], ((1,), (0,)))

        # construct_graph: adjacency = row-softmax of scaled slot similarity.
        sim = _dg(feats, feats, ((1,), (1,))) * scale                  # [S, S]
        m2 = jnp.max(sim, axis=-1, keepdims=True)
        e2 = jnp.exp(sim - m2)
        adj = e2 / jnp.sum(e2, axis=-1, keepdims=True)                 # [S, S]

        # graph_emb: single GCN layer  relu(adj @ feats @ Wg + bg)
        agg = _dg(adj, feats, ((1,), (0,)))                            # [S, D]
        refined = jnp.maximum(
            _dg(agg, wg_ref[...], ((1,), (0,))) + bg_ref[...], 0.0)    # [S, D]

        slots_out_ref[0] = (ALPHA * feats + BETA * refined).astype(
            slots_out_ref.dtype)


def _vmem_capacity_bytes():
    try:
        return int(pltpu.get_tpu_info().vmem_capacity_bytes)
    except Exception:
        return 128 * 1024 * 1024


def _round_up(x, m):
    return (x + m - 1) // m * m


def _plan_tiles(n_tokens, d, s, x_itemsize, attn_itemsize):
    """VMEM-budget-driven token-tile size + matching vmem_limit_bytes."""
    cap = _vmem_capacity_bytes()
    mib = 1024 * 1024
    # Streamed-operand budget: hard cap on 64-MiB-class parts (v7x) so the
    # triple-buffered x tile + double-buffered attn tile keep the DMA pipeline
    # alive; 128-MiB parts (v5e/v6e) can run much bigger tiles.
    stream_budget = 14 * mib if cap <= 64 * mib else 48 * mib
    per_token = 3 * d * x_itemsize + 2 * s * attn_itemsize
    t = (stream_budget // per_token) // 128 * 128
    t = max(128, min(int(t), 8192, _round_up(n_tokens, 128)))

    # Resident bytes (weights single-buffered, per-batch blocks double, scratch).
    resident = (2 * d * d * 4            # W_vu, Wg
                + 3 * d * 4              # input-LN gamma/beta, bg
                + 2 * s * d * 4          # slots in (double buffer)
                + 2 * s * d * 2          # qk in (bf16, double buffer)
                + 2 * s * d * 4          # slots out (double buffer)
                + s * d * 4 + 8 * 128 * 4)  # acc + lsum scratch (layout-padded)
    needed = 3 * t * d * x_itemsize + 2 * s * t * attn_itemsize + resident

    vmem_limit = max(needed + 8 * mib, 32 * mib)
    vmem_limit = min(vmem_limit, max(cap - 8 * mib, needed + 4 * mib))
    return t, int(vmem_limit)


def graph_corrector(slots, inputs, params, attn_dtype=jnp.float32):
    """slots: [B, S, D]; inputs: [B, H, W, D] (channels-last)."""
    B, S, D = slots.shape
    x = inputs.reshape(B, -1, inputs.shape[-1])        # flatten(1, 2)
    N = x.shape[1]
    scale = 1.0 / (float(D) ** 0.5)

    # Hoisted per-batch slot-side prologue (tiny [B, S, D] math): slot LN,
    # q = LN(slots) @ Wq * scale, qk = q @ Wk^T (folded so the streamed logits
    # matmul contracts x_ln directly, MXU trans_b, no per-token k projection).
    s_ln = _layernorm(slots.astype(jnp.float32),
                      params["ln_s_gamma"], params["ln_s_beta"])
    q = jnp.einsum("bsd,de->bse", s_ln, params["Wq"]) * scale
    qk = jnp.einsum("bsd,ed->bse", q, params["Wk"]).astype(MXU_DTYPE)  # q @ Wk^T
    w_vu = jnp.dot(params["Wv"], params["Wu"]).astype(jnp.float32)     # fold Wv@Wu

    attn_itemsize = jnp.dtype(attn_dtype).itemsize
    tN, vmem_limit = _plan_tiles(N, D, S, x.dtype.itemsize, attn_itemsize)
    N_pad = _round_up(N, tN)
    mask_tail = (N_pad != N)
    if mask_tail:
        x = jnp.pad(x, ((0, 0), (0, N_pad - N), (0, 0)))
    NT = N_pad // tN

    vec = lambda p: p.reshape(1, D)
    kernel = functools.partial(_graph_corrector_kernel,
                               n_tokens=N, tile_n=tN, mask_tail=mask_tail)

    out_shapes = (
        jax.ShapeDtypeStruct((B, S, D), jnp.float32),      # slots
        jax.ShapeDtypeStruct((B, S, N_pad), attn_dtype),   # attn (padded N)
    )

    def build(use_buffered):
        def spec(shape, index_map, bufs=None):
            if use_buffered and bufs is not None:
                return pl.BlockSpec(shape, index_map,
                                    pipeline_mode=pl.Buffered(bufs))
            return pl.BlockSpec(shape, index_map)

        const = lambda shape: spec(shape, lambda b, n: (0, 0), bufs=1)

        return pl.pallas_call(
            kernel,
            out_shape=out_shapes,
            grid_spec=pltpu.PrefetchScalarGridSpec(
                num_scalar_prefetch=0,
                grid=(B, NT),
                in_specs=[
                    spec((1, S, D), lambda b, n: (b, 0, 0)),            # slots (resident per b)
                    spec((1, tN, D), lambda b, n: (b, n, 0), bufs=3),   # tokens, streamed over N
                    spec((1, S, D), lambda b, n: (b, 0, 0)),            # qk = (LN(s)@Wq*scale)@Wk^T
                    const((1, D)), const((1, D)),                       # input-LN gamma/beta
                    const((D, D)),                                      # W_vu = Wv @ Wu
                    const((D, D)),                                      # Wg
                    const((1, D)),                                      # bg
                ],
                out_specs=[
                    pl.BlockSpec((1, S, D), lambda b, n: (b, 0, 0)),    # written at last N tile
                    pl.BlockSpec((1, S, tN), lambda b, n: (b, 0, n)),   # streamed attn tiles
                ],
                scratch_shapes=[
                    pltpu.VMEM((S, D), jnp.float32),   # acc = sum_n attn @ x_ln
                    pltpu.VMEM((S, 1), jnp.float32),   # per-slot attention mass
                ],
            ),
            compiler_params=pltpu.CompilerParams(
                dimension_semantics=("parallel", "arbitrary"),
                vmem_limit_bytes=vmem_limit,
            ),
        )

    args = (slots, x, qk,
            vec(params["ln_in_gamma"]), vec(params["ln_in_beta"]),
            w_vu, params["Wg"], vec(params["bg"]))

    try:
        slots_out, attn = build(True)(*args)
    except Exception:
        # pipeline_mode=pl.Buffered not supported on this jax build; fall back
        # to default double-buffering (same numerics, previously verified path).
        slots_out, attn = build(False)(*args)

    if mask_tail:
        attn = attn[:, :, :N]
    return slots_out, attn


def init_params(key, D):
    keys = jax.random.split(key, 5)
    s = D ** -0.5
    return {
        "ln_in_gamma": jnp.ones((D,), jnp.float32),
        "ln_in_beta": jnp.zeros((D,), jnp.float32),
        "ln_s_gamma": jnp.ones((D,), jnp.float32),
        "ln_s_beta": jnp.zeros((D,), jnp.float32),
        "Wk": (jax.random.normal(keys[0], (D, D), jnp.float32) * s),
        "Wv": (jax.random.normal(keys[1], (D, D), jnp.float32) * s),
        "Wq": (jax.random.normal(keys[2], (D, D), jnp.float32) * s),
        "Wu": (jax.random.normal(keys[3], (D, D), jnp.float32) * s),
        "Wg": (jax.random.normal(keys[4], (D, D), jnp.float32) * s),
        "bg": jnp.zeros((D,), jnp.float32),
    }


if __name__ == "__main__":
    B, S, D, H, W = 2, 8, 32, 8, 8
    root = jax.random.PRNGKey(0)
    k_slots, k_inputs, k_params = jax.random.split(root, 3)

    slots = jax.random.normal(k_slots, (B, S, D), jnp.float32)
    inputs = jax.random.normal(k_inputs, (B, H, W, D), jnp.float32)
    params = init_params(k_params, D)

    out_slots, attn = graph_corrector(slots, inputs, params)
    jax.block_until_ready((out_slots, attn))

    assert out_slots.shape == (B, S, D)
    assert attn.shape == (B, S, H * W)
    assert bool(jnp.all(jnp.isfinite(out_slots)))
    assert bool(jnp.all(jnp.isfinite(attn)))
    # per-location slot softmax should sum to ~1 over the slot axis
    assert bool(jnp.all(jnp.abs(jnp.sum(attn, axis=1) - 1.0) < 1e-2))
    print("KERNEL_OK")
</pallas_src>

<mosaic_0001>
module attributes {stable_mosaic.version = 11 : i64} {
  func.func @_graph_corrector_kernel(%arg0: i32, %arg1: i32, %arg2: memref<1x8x32xf32, #tpu.memory_space<vmem>>, %arg3: memref<1x128x32xf32, #tpu.memory_space<vmem>>, %arg4: memref<1x8x32xbf16, #tpu.memory_space<vmem>>, %arg5: memref<1x32xf32, #tpu.memory_space<vmem>>, %arg6: memref<1x32xf32, #tpu.memory_space<vmem>>, %arg7: memref<32x32xf32, #tpu.memory_space<vmem>>, %arg8: memref<32x32xf32, #tpu.memory_space<vmem>>, %arg9: memref<1x32xf32, #tpu.memory_space<vmem>>, %arg10: memref<1x8x32xf32, #tpu.memory_space<vmem>>, %arg11: memref<1x8x128xf32, #tpu.memory_space<vmem>>, %arg12: memref<8x32xf32, #tpu.memory_space<vmem>>, %arg13: memref<8x1xf32, #tpu.memory_space<vmem>>) attributes {dimension_semantics = [#tpu.dimension_semantics<parallel>, #tpu.dimension_semantics<arbitrary>], iteration_bounds = array<i64: 2, 1>, scalar_prefetch = 0 : i64, scratch_operands = 2 : i64, tpu.core_type = #tpu.core_type<tc>, window_params = [{transform_indices = @transform_0, window_bounds = array<i64: 1, 8, 32>}, {transform_indices = @transform_1, window_bounds = array<i64: 1, 128, 32>}, {transform_indices = @transform_2, window_bounds = array<i64: 1, 8, 32>}, {pipeline_mode = #tpu.pipeline_mode<synchronous>, transform_indices = @transform_3, window_bounds = array<i64: 1, 32>}, {pipeline_mode = #tpu.pipeline_mode<synchronous>, transform_indices = @transform_4, window_bounds = array<i64: 1, 32>}, {pipeline_mode = #tpu.pipeline_mode<synchronous>, transform_indices = @transform_5, window_bounds = array<i64: 32, 32>}, {pipeline_mode = #tpu.pipeline_mode<synchronous>, transform_indices = @transform_6, window_bounds = array<i64: 32, 32>}, {pipeline_mode = #tpu.pipeline_mode<synchronous>, transform_indices = @transform_7, window_bounds = array<i64: 1, 32>}, {transform_indices = @transform_8, window_bounds = array<i64: 1, 8, 32>}, {transform_indices = @transform_9, window_bounds = array<i64: 1, 8, 128>}]} {
    %c0_i32 = arith.constant 0 : i32
    %0 = arith.cmpi eq, %arg1, %c0_i32 : i32
    %1 = arith.extui %0 : i1 to i32
    %c0_i32_0 = arith.constant 0 : i32
    %2 = arith.cmpi ne, %1, %c0_i32_0 : i32
    scf.if %2 {
      %cst_33 = arith.constant 0.000000e+00 : f32
      %69 = vector.broadcast %cst_33 : f32 to vector<8x32xf32>
      %c0_34 = arith.constant 0 : index
      %c0_35 = arith.constant 0 : index
      %70 = vector.load %arg12[%c0_34, %c0_35] : memref<8x32xf32, #tpu.memory_space<vmem>>, vector<8x32xf32>
      tpu.vector_store %arg12[%c0_34, %c0_35], %69 {strides = array<i32>} : memref<8x32xf32, #tpu.memory_space<vmem>>, vector<8x32xf32>,
      %cst_36 = arith.constant 0.000000e+00 : f32
      %71 = vector.broadcast %cst_36 : f32 to vector<8x1xf32>
      %c0_37 = arith.constant 0 : index
      %c0_38 = arith.constant 0 : index
      %72 = vector.load %arg13[%c0_37, %c0_38] : memref<8x1xf32, #tpu.memory_space<vmem>>, vector<8x1xf32>
      tpu.vector_store %arg13[%c0_37, %c0_38], %71 {strides = array<i32>} : memref<8x1xf32, #tpu.memory_space<vmem>>, vector<8x1xf32>,
    } else {
    }
    %c0 = arith.constant 0 : index
    %c0_1 = arith.constant 0 : index
    %c0_2 = arith.constant 0 : index
    %3 = vector.load %arg3[%c0, %c0_1, %c0_2] : memref<1x128x32xf32, #tpu.memory_space<vmem>>, vector<1x128x32xf32>
    %4 = vector.shape_cast %3 : vector<1x128x32xf32> to vector<128x32xf32>
    %c0_3 = arith.constant 0 : index
    %c0_4 = arith.constant 0 : index
    %5 = vector.load %arg5[%c0_3, %c0_4] : memref<1x32xf32, #tpu.memory_space<vmem>>, vector<1x32xf32>
    %c0_5 = arith.constant 0 : index
    %c0_6 = arith.constant 0 : index
    %6 = vector.load %arg6[%c0_5, %c0_6] : memref<1x32xf32, #tpu.memory_space<vmem>>, vector<1x32xf32>
    %cst = arith.constant dense<0.000000e+00> : vector<128xf32>
    %7 = vector.multi_reduction <add>, %4, %cst [1] : vector<128x32xf32> to vector<128xf32>
    %8 = vector.shape_cast %7 : vector<128xf32> to vector<128x1xf32>
    %cst_7 = arith.constant 3.200000e+01 : f32
    %9 = vector.broadcast %cst_7 : f32 to vector<128x1xf32>
    %10 = arith.divf %8, %9 : vector<128x1xf32>
    %11 = vector.broadcast %10 : vector<128x1xf32> to vector<128x32xf32>
    %12 = arith.subf %4, %11 : vector<128x32xf32>
    %13 = arith.mulf %12, %12 : vector<128x32xf32>
    %cst_8 = arith.constant dense<0.000000e+00> : vector<128xf32>
    %14 = vector.multi_reduction <add>, %13, %cst_8 [1] : vector<128x32xf32> to vector<128xf32>
    %15 = vector.shape_cast %14 : vector<128xf32> to vector<128x1xf32>
    %cst_9 = arith.constant 3.200000e+01 : f32
    %16 = vector.broadcast %cst_9 : f32 to vector<128x1xf32>
    %17 = arith.divf %15, %16 : vector<128x1xf32>
    %18 = vector.broadcast %10 : vector<128x1xf32> to vector<128x32xf32>
    %19 = arith.subf %4, %18 : vector<128x32xf32>
    %cst_10 = arith.constant 9.99999974E-6 : f32
    %20 = vector.broadcast %cst_10 : f32 to vector<128x1xf32>
    %21 = arith.addf %17, %20 : vector<128x1xf32>
    %22 = math.rsqrt %21 : vector<128x1xf32>
    %23 = vector.broadcast %22 : vector<128x1xf32> to vector<128x32xf32>
    %24 = arith.mulf %19, %23 : vector<128x32xf32>
    %25 = vector.broadcast %5 : vector<1x32xf32> to vector<128x32xf32>
    %26 = arith.mulf %24, %25 : vector<128x32xf32>
    %27 = vector.broadcast %6 : vector<1x32xf32> to vector<128x32xf32>
    %28 = arith.addf %26, %27 : vector<128x32xf32>
    %29 = arith.truncf %28 : vector<128x32xf32> to vector<128x32xbf16>
    %c0_11 = arith.constant 0 : index
    %c0_12 = arith.constant 0 : index
    %c0_13 = arith.constant 0 : index
    %30 = vector.load %arg4[%c0_11, %c0_12, %c0_13] : memref<1x8x32xbf16, #tpu.memory_space<vmem>>, vector<1x8x32xbf16>
    %31 = vector.shape_cast %30 : vector<1x8x32xbf16> to vector<8x32xbf16>
    %cst_14 = arith.constant dense<0.000000e+00> : vector<8x128xf32>
    %32 = tpu.matmul %31, %29, %cst_14 {dimension_numbers = #tpu.dot_dimension_numbers<[1], [1], [0], [0], [0, 0, 1, 0], [], []>} : vector<8x32xbf16>, vector<128x32xbf16>, vector<8x128xf32> -> vector<8x128xf32>
    %cst_15 = arith.constant dense<0xFF800000> : vector<128xf32>
    %33 = vector.multi_reduction <maximumf>, %32, %cst_15 [0] : vector<8x128xf32> to vector<128xf32>
    %34 = vector.shape_cast %33 : vector<128xf32> to vector<1x128xf32>
    %35 = vector.broadcast %34 : vector<1x128xf32> to vector<8x128xf32>
    %36 = arith.subf %32, %35 : vector<8x128xf32>
    %37 = math.exp %36 : vector<8x128xf32>
    %cst_16 = arith.constant dense<0.000000e+00> : vector<128xf32>
    %38 = vector.multi_reduction <add>, %37, %cst_16 [0] : vector<8x128xf32> to vector<128xf32>
    %39 = vector.shape_cast %38 : vector<128xf32> to vector<1x128xf32>
    %40 = tpu.reciprocal %39 {approx = true} : vector<1x128xf32> -> vector<1x128xf32>
    %41 = vector.broadcast %40 : vector<1x128xf32> to vector<8x128xf32>
    %42 = arith.mulf %37, %41 : vector<8x128xf32>
    %c128_i32 = arith.constant 128 : i32
    %43 = arith.muli %arg1, %c128_i32 : i32
    %44 = tpu.iota {dimensions = array<i32: 1>} : vector<1x128xi32>
    %45 = vector.broadcast %43 : i32 to vector<1x128xi32>
    %46 = arith.addi %45, %44 : vector<1x128xi32>
    %c64_i32 = arith.constant 64 : i32
    %47 = vector.broadcast %c64_i32 : i32 to vector<1x128xi32>
    %48 = arith.cmpi slt, %46, %47 : vector<1x128xi32>
    %cst_17 = arith.constant 0.000000e+00 : f32
    %49 = vector.shape_cast %48 : vector<1x128xi1> to vector<1x128xi1>
    %50 = vector.broadcast %49 : vector<1x128xi1> to vector<8x128xi1>
    %51 = vector.broadcast %cst_17 : f32 to vector<8x128xf32>
    %52 = arith.select %50, %42, %51 : vector<8x128xi1>, vector<8x128xf32>
    %c0_18 = arith.constant 0 : index
    %c0_19 = arith.constant 0 : index
    %c0_20 = arith.constant 0 : index
    %53 = vector.load %arg11[%c0_18, %c0_19, %c0_20] : memref<1x8x128xf32, #tpu.memory_space<vmem>>, vector<1x8x128xf32>
    %54 = vector.shape_cast %53 : vector<1x8x128xf32> to vector<8x128xf32>
    %55 = vector.shape_cast %52 : vector<8x128xf32> to vector<1x8x128xf32>
    tpu.vector_store %arg11[%c0_18, %c0_19, %c0_20], %55 {strides = array<i32>} : memref<1x8x128xf32, #tpu.memory_space<vmem>>, vector<1x8x128xf32>,
    %c0_21 = arith.constant 0 : index
    %c0_22 = arith.constant 0 : index
    %56 = vector.load %arg12[%c0_21, %c0_22] : memref<8x32xf32, #tpu.memory_space<vmem>>, vector<8x32xf32>
    %57 = arith.truncf %52 : vector<8x128xf32> to vector<8x128xbf16>
    %cst_23 = arith.constant dense<0.000000e+00> : vector<8x32xf32>
    %58 = tpu.matmul %57, %29, %cst_23 {dimension_numbers = #tpu.dot_dimension_numbers<[1], [0], [0], [1], [0, 0, 1, 1], [], []>} : vector<8x128xbf16>, vector<128x32xbf16>, vector<8x32xf32> -> vector<8x32xf32>
    %59 = arith.addf %56, %58 : vector<8x32xf32>
    %c0_24 = arith.constant 0 : index
    %c0_25 = arith.constant 0 : index
    %60 = vector.load %arg12[%c0_24, %c0_25] : memref<8x32xf32, #tpu.memory_space<vmem>>, vector<8x32xf32>
    tpu.vector_store %arg12[%c0_24, %c0_25], %59 {strides = array<i32>} : memref<8x32xf32, #tpu.memory_space<vmem>>, vector<8x32xf32>,
    %c0_26 = arith.constant 0 : index
    %c0_27 = arith.constant 0 : index
    %61 = vector.load %arg13[%c0_26, %c0_27] : memref<8x1xf32, #tpu.memory_space<vmem>>, vector<8x1xf32>
    %cst_28 = arith.constant dense<0.000000e+00> : vector<8xf32>
    %62 = vector.multi_reduction <add>, %52, %cst_28 [1] : vector<8x128xf32> to vector<8xf32>
    %63 = vector.shape_cast %62 : vector<8xf32> to vector<8x1xf32>
    %64 = arith.addf %61, %63 : vector<8x1xf32>
    %c0_29 = arith.constant 0 : index
    %c0_30 = arith.constant 0 : index
    %65 = vector.load %arg13[%c0_29, %c0_30] : memref<8x1xf32, #tpu.memory_space<vmem>>, vector<8x1xf32>
    tpu.vector_store %arg13[%c0_29, %c0_30], %64 {strides = array<i32>} : memref<8x1xf32, #tpu.memory_space<vmem>>, vector<8x1xf32>,
    %c0_i32_31 = arith.constant 0 : i32
    %66 = arith.cmpi eq, %arg1, %c0_i32_31 : i32
    %67 = arith.extui %66 : i1 to i32
    %c0_i32_32 = arith.constant 0 : i32
    %68 = arith.cmpi ne, %67, %c0_i32_32 : i32
    scf.if %68 {
      %c0_33 = arith.constant 0 : index
      %c0_34 = arith.constant 0 : index
      %c0_35 = arith.constant 0 : index
      %69 = vector.load %arg2[%c0_33, %c0_34, %c0_35] : memref<1x8x32xf32, #tpu.memory_space<vmem>>, vector<1x8x32xf32>
      %70 = vector.shape_cast %69 : vector<1x8x32xf32> to vector<8x32xf32>
      %c0_36 = arith.constant 0 : index
      %c0_37 = arith.constant 0 : index
      %71 = vector.load %arg13[%c0_36, %c0_37] : memref<8x1xf32, #tpu.memory_space<vmem>>, vector<8x1xf32>
      %cst_38 = arith.constant 9.99999993E-9 : f32
      %72 = vector.broadcast %cst_38 : f32 to vector<8x1xf32>
      %73 = arith.addf %71, %72 : vector<8x1xf32>
      %cst_39 = arith.constant 1.000000e+00 : f32
      %74 = vector.broadcast %cst_39 : f32 to vector<8x1xf32>
      %75 = arith.divf %74, %73 : vector<8x1xf32>
      %c0_40 = arith.constant 0 : index
      %c0_41 = arith.constant 0 : index
      %76 = vector.load %arg12[%c0_40, %c0_41] : memref<8x32xf32, #tpu.memory_space<vmem>>, vector<8x32xf32>
      %77 = vector.broadcast %75 : vector<8x1xf32> to vector<8x32xf32>
      %78 = arith.mulf %76, %77 : vector<8x32xf32>
      %c0_42 = arith.constant 0 : index
      %c0_43 = arith.constant 0 : index
      %79 = vector.load %arg7[%c0_42, %c0_43] : memref<32x32xf32, #tpu.memory_space<vmem>>, vector<32x32xf32>
      %cst_44 = arith.constant dense<0.000000e+00> : vector<8x32xf32>
      %80 = tpu.matmul %78, %79, %cst_44 {dimension_numbers = #tpu.dot_dimension_numbers<[1], [0], [0], [1], [0, 0, 1, 1], [], []>} : vector<8x32xf32>, vector<32x32xf32>, vector<8x32xf32> -> vector<8x32xf32>
      %81 = arith.addf %70, %80 : vector<8x32xf32>
      %cst_45 = arith.constant dense<0.000000e+00> : vector<8x8xf32>
      %82 = tpu.matmul %81, %81, %cst_45 {dimension_numbers = #tpu.dot_dimension_numbers<[1], [1], [0], [0], [0, 0, 1, 0], [], []>} : vector<8x32xf32>, vector<8x32xf32>, vector<8x8xf32> -> vector<8x8xf32>
      %cst_46 = arith.constant 0.176776692 : f32
      %83 = vector.broadcast %cst_46 : f32 to vector<8x8xf32>
      %84 = arith.mulf %82, %83 : vector<8x8xf32>
      %cst_47 = arith.constant dense<0xFF800000> : vector<8xf32>
      %85 = vector.multi_reduction <maximumf>, %84, %cst_47 [1] : vector<8x8xf32> to vector<8xf32>
      %86 = vector.shape_cast %85 : vector<8xf32> to vector<8x1xf32>
      %87 = vector.broadcast %86 : vector<8x1xf32> to vector<8x8xf32>
      %88 = arith.subf %84, %87 : vector<8x8xf32>
      %89 = math.exp %88 : vector<8x8xf32>
      %cst_48 = arith.constant dense<0.000000e+00> : vector<8xf32>
      %90 = vector.multi_reduction <add>, %89, %cst_48 [1] : vector<8x8xf32> to vector<8xf32>
      %91 = vector.shape_cast %90 : vector<8xf32> to vector<8x1xf32>
      %92 = vector.broadcast %91 : vector<8x1xf32> to vector<8x8xf32>
      %93 = arith.divf %89, %92 : vector<8x8xf32>
      %cst_49 = arith.constant dense<0.000000e+00> : vector<8x32xf32>
      %94 = tpu.matmul %93, %81, %cst_49 {dimension_numbers = #tpu.dot_dimension_numbers<[1], [0], [0], [1], [0, 0, 1, 1], [], []>} : vector<8x8xf32>, vector<8x32xf32>, vector<8x32xf32> -> vector<8x32xf32>
      %c0_50 = arith.constant 0 : index
      %c0_51 = arith.constant 0 : index
      %95 = vector.load %arg8[%c0_50, %c0_51] : memref<32x32xf32, #tpu.memory_space<vmem>>, vector<32x32xf32>
      %cst_52 = arith.constant dense<0.000000e+00> : vector<8x32xf32>
      %96 = tpu.matmul %94, %95, %cst_52 {dimension_numbers = #tpu.dot_dimension_numbers<[1], [0], [0], [1], [0, 0, 1, 1], [], []>} : vector<8x32xf32>, vector<32x32xf32>, vector<8x32xf32> -> vector<8x32xf32>
      %c0_53 = arith.constant 0 : index
      %c0_54 = arith.constant 0 : index
      %97 = vector.load %arg9[%c0_53, %c0_54] : memref<1x32xf32, #tpu.memory_space<vmem>>, vector<1x32xf32>
      %98 = vector.broadcast %97 : vector<1x32xf32> to vector<8x32xf32>
      %99 = arith.addf %96, %98 : vector<8x32xf32>
      %cst_55 = arith.constant 0.000000e+00 : f32
      %100 = vector.broadcast %cst_55 : f32 to vector<8x32xf32>
      %101 = arith.maximumf %99, %100 : vector<8x32xf32>
      %cst_56 = arith.constant 1.000000e+00 : f32
      %102 = vector.broadcast %cst_56 : f32 to vector<8x32xf32>
      %103 = arith.mulf %102, %81 : vector<8x32xf32>
      %cst_57 = arith.constant 1.000000e+00 : f32
      %104 = vector.broadcast %cst_57 : f32 to vector<8x32xf32>
      %105 = arith.mulf %104, %101 : vector<8x32xf32>
      %106 = arith.addf %103, %105 : vector<8x32xf32>
      %c0_58 = arith.constant 0 : index
      %c0_59 = arith.constant 0 : index
      %c0_60 = arith.constant 0 : index
      %107 = vector.load %arg10[%c0_58, %c0_59, %c0_60] : memref<1x8x32xf32, #tpu.memory_space<vmem>>, vector<1x8x32xf32>
      %108 = vector.shape_cast %107 : vector<1x8x32xf32> to vector<8x32xf32>
      %109 = vector.shape_cast %106 : vector<8x32xf32> to vector<1x8x32xf32>
      tpu.vector_store %arg10[%c0_58, %c0_59, %c0_60], %109 {strides = array<i32>} : memref<1x8x32xf32, #tpu.memory_space<vmem>>, vector<1x8x32xf32>,
    } else {
    }
    return
  }
  func.func @transform_0(%arg0: i32, %arg1: i32) -> (i32, i32, i32) {
    %c0_i32 = arith.constant 0 : i32
    %c0_i32_0 = arith.constant 0 : i32
    %c0_i32_1 = arith.constant 0 : i32
    return %arg0, %c0_i32, %c0_i32_0 : i32, i32, i32
  }
  func.func @transform_1(%arg0: i32, %arg1: i32) -> (i32, i32, i32) {
    %c0_i32 = arith.constant 0 : i32
    %c0_i32_0 = arith.constant 0 : i32
    return %arg0, %arg1, %c0_i32 : i32, i32, i32
  }
  func.func @transform_2(%arg0: i32, %arg1: i32) -> (i32, i32, i32) {
    %c0_i32 = arith.constant 0 : i32
    %c0_i32_0 = arith.constant 0 : i32
    %c0_i32_1 = arith.constant 0 : i32
    return %arg0, %c0_i32, %c0_i32_0 : i32, i32, i32
  }
  func.func @transform_3(%arg0: i32, %arg1: i32) -> (i32, i32) {
    %c0_i32 = arith.constant 0 : i32
    %c0_i32_0 = arith.constant 0 : i32
    %c0_i32_1 = arith.constant 0 : i32
    return %c0_i32, %c0_i32_0 : i32, i32
  }
  func.func @transform_4(%arg0: i32, %arg1: i32) -> (i32, i32) {
    %c0_i32 = arith.constant 0 : i32
    %c0_i32_0 = arith.constant 0 : i32
    %c0_i32_1 = arith.constant 0 : i32
    return %c0_i32, %c0_i32_0 : i32, i32
  }
  func.func @transform_5(%arg0: i32, %arg1: i32) -> (i32, i32) {
    %c0_i32 = arith.constant 0 : i32
    %c0_i32_0 = arith.constant 0 : i32
    %c0_i32_1 = arith.constant 0 : i32
    return %c0_i32, %c0_i32_0 : i32, i32
  }
  func.func @transform_6(%arg0: i32, %arg1: i32) -> (i32, i32) {
    %c0_i32 = arith.constant 0 : i32
    %c0_i32_0 = arith.constant 0 : i32
    %c0_i32_1 = arith.constant 0 : i32
    return %c0_i32, %c0_i32_0 : i32, i32
  }
  func.func @transform_7(%arg0: i32, %arg1: i32) -> (i32, i32) {
    %c0_i32 = arith.constant 0 : i32
    %c0_i32_0 = arith.constant 0 : i32
    %c0_i32_1 = arith.constant 0 : i32
    return %c0_i32, %c0_i32_0 : i32, i32
  }
  func.func @transform_8(%arg0: i32, %arg1: i32) -> (i32, i32, i32) {
    %c0_i32 = arith.constant 0 : i32
    %c0_i32_0 = arith.constant 0 : i32
    %c0_i32_1 = arith.constant 0 : i32
    return %arg0, %c0_i32, %c0_i32_0 : i32, i32, i32
  }
  func.func @transform_9(%arg0: i32, %arg1: i32) -> (i32, i32, i32) {
    %c0_i32 = arith.constant 0 : i32
    %c0_i32_0 = arith.constant 0 : i32
    return %arg0, %c0_i32, %arg1 : i32, i32, i32
  }
}

</mosaic_0001>

<llo_original>
// kernel: tpu_custom_call.1
$region0: #{tpu_custom_call.1}
  #allocation0 [shape = 'u32[]', space=smem, size = 0x4, offset = 0x4, fixed_abs, tag = 'smem constant byte address 0x4 - core index']
  #allocation1 [shape = 'u32[72,128]{1,0:T(1,128)}', space=vmem, size = 0x9000, scoped, tag = 'internal scratch']
  #allocation2 [shape = 'f32[8,32]{1,0:T(8,128)}', space=vmem, size = 0x1000, scoped, tag = 'scratch operand']
  #allocation3 [shape = 'f32[8,1]{1,0:T(8,128)}', space=vmem, size = 0x1000, scoped, tag = 'scratch operand']
  %s0 = inlined_call_operand.vmem [shape: f32[2,8,32], index: 0, kind: input, shape index: {}]
  %s1 = inlined_call_operand.vmem [shape: f32[2,128,32], index: 1, kind: input, shape index: {}]
  %s2 = inlined_call_operand.vmem [shape: bf16[2,8,32], index: 2, kind: input, shape index: {}]
  %s3 = inlined_call_operand.vmem [shape: f32[1,32], index: 3, kind: input, shape index: {}]
  %s4 = inlined_call_operand.vmem [shape: f32[1,32], index: 4, kind: input, shape index: {}]
  %s5 = inlined_call_operand.vmem [shape: f32[32,32], index: 5, kind: input, shape index: {}]
  %s6 = inlined_call_operand.vmem [shape: f32[32,32], index: 6, kind: input, shape index: {}]
  %s7 = inlined_call_operand.vmem [shape: f32[1,32], index: 7, kind: input, shape index: {}]
  %s8 = inlined_call_operand.hbm [shape: f32[2,8,32], index: 8, kind: output, shape index: {0}]
  %s9 = inlined_call_operand.hbm [shape: f32[2,8,128], index: 9, kind: output, shape index: {1}]
  %10 = xla_tuple %s8, %s9
  %s11 = sld [smem:[#allocation0]]
  $region81: #{tpu_custom_call.1} parent=0
    _
  %s13 = ssub.s32 1, %s11
  %s14 = scalar_select 0, %s13, %s11
  $region1: #{tpu_custom_call.1} parent=0
    #allocation4 [shape = 'u8[8192]{0}', space=vmem, size = 0x2000, scoped, tag = 'output window, operand 0']
    #allocation5 [shape = 's32[2]{0}', space=sflag, size = 0x8, scoped, tag = 'scoped memory for tpu_custom_call.1']
    #allocation6 [shape = 'u8[8192]{0}', space=vmem, size = 0x2000, scoped, tag = 'output window, operand 1']
    #allocation7 [shape = 's32[2]{0}', space=sflag, size = 0x8, scoped, tag = 'scoped memory for tpu_custom_call.1']
    %15 = vsyncpa [#allocation5], 0
    %s16 = scalar_lea.sflag [#allocation5], 1
    %17 = vsyncpa %s16, 0
    %18 = vsyncpa [#allocation7], 0
    %s19 = scalar_lea.sflag [#allocation7], 1
    %20 = vsyncpa %s19, 0
    loop: start=0, step=1, limit=4
    $region2: #{tpu_custom_call.1} parent=1 // loop_pre_header
      _
    $region3: #{tpu_custom_call.1} parent=1 // loop_header
      %s22 = sphi 0, %s26
      %p23 = scmp.ge.s32.totalorder %s22, 4
      %s29 = sphi 0, %s41
      %s30 = sphi 0, %s37
      %s31 = sphi 0, %s29
      %s32 = sphi 0, %s30
      %s33 = sphi 0, %s31
      %s34 = sphi 0, %s32
      %s44 = sphi 0, %s46
      %s47 = sphi 0, %s44
      %s48 = sphi 0, %s47
      %s64 = sphi 0, %s48
      %s72 = sphi 0, %s74
      %s75 = sphi 0, %s72
      %s76 = sphi 0, %s75
      %s92 = sphi 0, %s76
      %s98 = sphi 0, %s100
      %s101 = sphi 0, %s98
      %s102 = sphi 0, %s101
      %s118 = sphi 0, %s102
      %s122 = sphi 0, %s122
      %s124 = sphi 0, %s122
      %s125 = sphi 0, %s124
      %s139 = sphi 0, %s125
      %s143 = sphi 0, %s143
      %s145 = sphi 0, %s143
      %s146 = sphi 0, %s145
      %s160 = sphi 0, %s146
      %s164 = sphi 0, %s164
      %s166 = sphi 0, %s164
      %s167 = sphi 0, %s166
      %s181 = sphi 0, %s167
      %s185 = sphi 0, %s185
      %s187 = sphi 0, %s185
      %s188 = sphi 0, %s187
      %s202 = sphi 0, %s188
      %s206 = sphi 0, %s206
      %s208 = sphi 0, %s206
      %s209 = sphi 0, %s208
      %s223 = sphi 0, %s209
      %s229 = sphi 0, %s231
      %s232 = sphi 0, %s229
      %s233 = sphi 0, %s232
      %s249 = sphi 0, %s233
      %s257 = sphi 0, %s259
      %s260 = sphi 0, %s257
      %s261 = sphi 0, %s260
      %s277 = sphi 0, %s261
    $region4: #{tpu_custom_call.1} parent=1 // loop_header_branch
      %25 = sbr.rel (%p23) target = $region8
    $region5: #{tpu_custom_call.1} parent=1 // loop_body
      %s27 = ssub.s32 %s22, 1
      %s28 = ssub.s32 %s22, 2
      %s35 = sadd.s32 1, %s30
      %p36 = scmp.ge.s32.totalorder %s35, 1
      %s37 = scalar_select %p36, 0, %s35
      %s38 = sadd.s32 1, %s29
      %s39 = scalar_select %p36, %s38, %s29
      %p40 = scmp.ge.s32.totalorder %s39, 2
      %s41 = scalar_select %p40, 0, %s39
      %s42 = ssub.s32 %s29, %s41
      %p43 = scmp.eq.s32.totalorder %s42, 0
      %s45 = sadd.s32 %s44, 1
      %s46 = scalar_select %p43, %s44, %s45
      %p49 = pneg %p43
      %p50 = scmp.eq.s32.totalorder %s22, 1
      %p51 = por %p49, %p50
      %p52 = scmp.ne.s32.totalorder %s44, %s47
      %p53 = scmp.eq.s32.totalorder %s22, 0
      %p54 = por %p52, %p53
      %p55 = scmp.ne.s32.totalorder %s44, %s47
      %p56 = scmp.eq.s32.totalorder %s27, 1
      %p57 = por %p55, %p56
      %p58 = scmp.ne.s32.totalorder %s47, %s48
      %p59 = scmp.eq.s32.totalorder %s27, 0
      %p60 = por %p58, %p59
      %p61 = scmp.ne.s32.totalorder %s47, %s48
      %p62 = scmp.eq.s32.totalorder %s28, 1
      %p63 = por %p61, %p62
      %p65 = scmp.ne.s32.totalorder %s48, %s64
      %p66 = scmp.eq.s32.totalorder %s28, 0
      %p67 = por %p65, %p66
      %s68 = ssub.s32 %s29, %s41
      %s69 = ssub.s32 %s30, %s37
      %s70 = sor.u32 %s68, %s69
      %p71 = scmp.eq.s32.totalorder %s70, 0
      %s73 = sadd.s32 %s72, 1
      %s74 = scalar_select %p71, %s72, %s73
      %p77 = pneg %p71
      %p78 = scmp.eq.s32.totalorder %s22, 1
      %p79 = por %p77, %p78
      %p80 = scmp.ne.s32.totalorder %s72, %s75
      %p81 = scmp.eq.s32.totalorder %s22, 0
      %p82 = por %p80, %p81
      %p83 = scmp.ne.s32.totalorder %s72, %s75
      %p84 = scmp.eq.s32.totalorder %s27, 1
      %p85 = por %p83, %p84
      %p86 = scmp.ne.s32.totalorder %s75, %s76
      %p87 = scmp.eq.s32.totalorder %s27, 0
      %p88 = por %p86, %p87
      %p89 = scmp.ne.s32.totalorder %s75, %s76
      %p90 = scmp.eq.s32.totalorder %s28, 1
      %p91 = por %p89, %p90
      %p93 = scmp.ne.s32.totalorder %s76, %s92
      %p94 = scmp.eq.s32.totalorder %s28, 0
      %p95 = por %p93, %p94
      %s96 = ssub.s32 %s29, %s41
      %p97 = scmp.eq.s32.totalorder %s96, 0
      %s99 = sadd.s32 %s98, 1
      %s100 = scalar_select %p97, %s98, %s99
      %p103 = pneg %p97
      %p104 = scmp.eq.s32.totalorder %s22, 1
      %p105 = por %p103, %p104
      %p106 = scmp.ne.s32.totalorder %s98, %s101
      %p107 = scmp.eq.s32.totalorder %s22, 0
      %p108 = por %p106, %p107
      %p109 = scmp.ne.s32.totalorder %s98, %s101
      %p110 = scmp.eq.s32.totalorder %s27, 1
      %p111 = por %p109, %p110
      %p112 = scmp.ne.s32.totalorder %s101, %s102
      %p113 = scmp.eq.s32.totalorder %s27, 0
      %p114 = por %p112, %p113
      %p115 = scmp.ne.s32.totalorder %s101, %s102
      %p116 = scmp.eq.s32.totalorder %s28, 1
      %p117 = por %p115, %p116
      %p119 = scmp.ne.s32.totalorder %s102, %s118
      %p120 = scmp.eq.s32.totalorder %s28, 0
      %p121 = por %p119, %p120
      %s123 = sadd.s32 %s122, 1
      %p126 = scmp.eq.s32.totalorder %s22, 1
      %p127 = scmp.ne.s32.totalorder %s122, %s124
      %p128 = scmp.eq.s32.totalorder %s22, 0
      %p129 = por %p127, %p128
      %p130 = scmp.ne.s32.totalorder %s122, %s124
      %p131 = scmp.eq.s32.totalorder %s27, 1
      %p132 = por %p130, %p131
      %p133 = scmp.ne.s32.totalorder %s124, %s125
      %p134 = scmp.eq.s32.totalorder %s27, 0
      %p135 = por %p133, %p134
      %p136 = scmp.ne.s32.totalorder %s124, %s125
      %p137 = scmp.eq.s32.totalorder %s28, 1
      %p138 = por %p136, %p137
      %p140 = scmp.ne.s32.totalorder %s125, %s139
      %p141 = scmp.eq.s32.totalorder %s28, 0
      %p142 = por %p140, %p141
      %s144 = sadd.s32 %s143, 1
      %p147 = scmp.eq.s32.totalorder %s22, 1
      %p148 = scmp.ne.s32.totalorder %s143, %s145
      %p149 = scmp.eq.s32.totalorder %s22, 0
      %p150 = por %p148, %p149
      %p151 = scmp.ne.s32.totalorder %s143, %s145
      %p152 = scmp.eq.s32.totalorder %s27, 1
      %p153 = por %p151, %p152
      %p154 = scmp.ne.s32.totalorder %s145, %s146
      %p155 = scmp.eq.s32.totalorder %s27, 0
      %p156 = por %p154, %p155
      %p157 = scmp.ne.s32.totalorder %s145, %s146
      %p158 = scmp.eq.s32.totalorder %s28, 1
      %p159 = por %p157, %p158
      %p161 = scmp.ne.s32.totalorder %s146, %s160
      %p162 = scmp.eq.s32.totalorder %s28, 0
      %p163 = por %p161, %p162
      %s165 = sadd.s32 %s164, 1
      %p168 = scmp.eq.s32.totalorder %s22, 1
      %p169 = scmp.ne.s32.totalorder %s164, %s166
      %p170 = scmp.eq.s32.totalorder %s22, 0
      %p171 = por %p169, %p170
      %p172 = scmp.ne.s32.totalorder %s164, %s166
      %p173 = scmp.eq.s32.totalorder %s27, 1
      %p174 = por %p172, %p173
      %p175 = scmp.ne.s32.totalorder %s166, %s167
      %p176 = scmp.eq.s32.totalorder %s27, 0
      %p177 = por %p175, %p176
      %p178 = scmp.ne.s32.totalorder %s166, %s167
      %p179 = scmp.eq.s32.totalorder %s28, 1
      %p180 = por %p178, %p179
      %p182 = scmp.ne.s32.totalorder %s167, %s181
      %p183 = scmp.eq.s32.totalorder %s28, 0
      %p184 = por %p182, %p183
      %s186 = sadd.s32 %s185, 1
      %p189 = scmp.eq.s32.totalorder %s22, 1
      %p190 = scmp.ne.s32.totalorder %s185, %s187
      %p191 = scmp.eq.s32.totalorder %s22, 0
      %p192 = por %p190, %p191
      %p193 = scmp.ne.s32.totalorder %s185, %s187
      %p194 = scmp.eq.s32.totalorder %s27, 1
      %p195 = por %p193, %p194
      %p196 = scmp.ne.s32.totalorder %s187, %s188
      %p197 = scmp.eq.s32.totalorder %s27, 0
      %p198 = por %p196, %p197
      %p199 = scmp.ne.s32.totalorder %s187, %s188
      %p200 = scmp.eq.s32.totalorder %s28, 1
      %p201 = por %p199, %p200
      %p203 = scmp.ne.s32.totalorder %s188, %s202
      %p204 = scmp.eq.s32.totalorder %s28, 0
      %p205 = por %p203, %p204
      %s207 = sadd.s32 %s206, 1
      %p210 = scmp.eq.s32.totalorder %s22, 1
      %p211 = scmp.ne.s32.totalorder %s206, %s208
      %p212 = scmp.eq.s32.totalorder %s22, 0
      %p213 = por %p211, %p212
      %p214 = scmp.ne.s32.totalorder %s206, %s208
      %p215 = scmp.eq.s32.totalorder %s27, 1
      %p216 = por %p214, %p215
      %p217 = scmp.ne.s32.totalorder %s208, %s209
      %p218 = scmp.eq.s32.totalorder %s27, 0
      %p219 = por %p217, %p218
      %p220 = scmp.ne.s32.totalorder %s208, %s209
      %p221 = scmp.eq.s32.totalorder %s28, 1
      %p222 = por %p220, %p221
      %p224 = scmp.ne.s32.totalorder %s209, %s223
      %p225 = scmp.eq.s32.totalorder %s28, 0
      %p226 = por %p224, %p225
      %s227 = ssub.s32 %s29, %s41
      %p228 = scmp.eq.s32.totalorder %s227, 0
      %s230 = sadd.s32 %s229, 1
      %s231 = scalar_select %p228, %s229, %s230
      %p234 = pneg %p228
      %p235 = scmp.eq.s32.totalorder %s22, 1
      %p236 = por %p234, %p235
      %p237 = scmp.ne.s32.totalorder %s229, %s232
      %p238 = scmp.eq.s32.totalorder %s22, 0
      %p239 = por %p237, %p238
      %p240 = scmp.ne.s32.totalorder %s229, %s232
      %p241 = scmp.eq.s32.totalorder %s27, 1
      %p242 = por %p240, %p241
      %p243 = scmp.ne.s32.totalorder %s232, %s233
      %p244 = scmp.eq.s32.totalorder %s27, 0
      %p245 = por %p243, %p244
      %p246 = scmp.ne.s32.totalorder %s232, %s233
      %p247 = scmp.eq.s32.totalorder %s28, 1
      %p248 = por %p246, %p247
      %p250 = scmp.ne.s32.totalorder %s233, %s249
      %p251 = scmp.eq.s32.totalorder %s28, 0
      %p252 = por %p250, %p251
      %s253 = ssub.s32 %s29, %s41
      %s254 = ssub.s32 %s30, %s37
      %s255 = sor.u32 %s253, %s254
      %p256 = scmp.eq.s32.totalorder %s255, 0
      %s258 = sadd.s32 %s257, 1
      %s259 = scalar_select %p256, %s257, %s258
      %p262 = pneg %p256
      %p263 = scmp.eq.s32.totalorder %s22, 1
      %p264 = por %p262, %p263
      %p265 = scmp.ne.s32.totalorder %s257, %s260
      %p266 = scmp.eq.s32.totalorder %s22, 0
      %p267 = por %p265, %p266
      %p268 = scmp.ne.s32.totalorder %s257, %s260
      %p269 = scmp.eq.s32.totalorder %s27, 1
      %p270 = por %p268, %p269
      %p271 = scmp.ne.s32.totalorder %s260, %s261
      %p272 = scmp.eq.s32.totalorder %s27, 0
      %p273 = por %p271, %p272
      %p274 = scmp.ne.s32.totalorder %s260, %s261
      %p275 = scmp.eq.s32.totalorder %s28, 1
      %p276 = por %p274, %p275
      %p278 = scmp.ne.s32.totalorder %s261, %s277
      %p279 = scmp.eq.s32.totalorder %s28, 0
      %p280 = por %p278, %p279
      %p281 = scmp.le.s32.totalorder 1, %s22
      %p282 = scmp.lt.s32.totalorder %s22, 3
      %p283 = pnand %p281, %p282
      %p284 = pneg %p283
      // Predicated region
      $region9: #{tpu_custom_call.1} parent=5 // pred_check
        _
      $region10: #{tpu_custom_call.1} parent=5 // pred_check_branch
        %286 = sbr.rel (%p283) target = $region12
      $region11: #{tpu_custom_call.1} parent=5 // pred_region
        %s287 = ssub.s32 %s22, 1
        // Predicated region
        $region13: #{tpu_custom_call.1} parent=11 // pred_check
          %p288 = pneg %p135
        $region14: #{tpu_custom_call.1} parent=11 // pred_check_branch
          %290 = sbr.rel (%p288) target = $region16
        $region15: #{tpu_custom_call.1} parent=11 // pred_region
          _
        $region16: #{tpu_custom_call.1} parent=11 // pred_fallthru
          _
        // Predicated region
        $region17: #{tpu_custom_call.1} parent=11 // pred_check
          %p291 = pneg %p156
        $region18: #{tpu_custom_call.1} parent=11 // pred_check_branch
          %293 = sbr.rel (%p291) target = $region20
        $region19: #{tpu_custom_call.1} parent=11 // pred_region
          _
        $region20: #{tpu_custom_call.1} parent=11 // pred_fallthru
          _
        // Predicated region
        $region21: #{tpu_custom_call.1} parent=11 // pred_check
          %p294 = pneg %p177
        $region22: #{tpu_custom_call.1} parent=11 // pred_check_branch
          %296 = sbr.rel (%p294) target = $region24
        $region23: #{tpu_custom_call.1} parent=11 // pred_region
          _
        $region24: #{tpu_custom_call.1} parent=11 // pred_fallthru
          _
        // Predicated region
        $region25: #{tpu_custom_call.1} parent=11 // pred_check
          %p297 = pneg %p198
        $region26: #{tpu_custom_call.1} parent=11 // pred_check_branch
          %299 = sbr.rel (%p297) target = $region28
        $region27: #{tpu_custom_call.1} parent=11 // pred_region
          _
        $region28: #{tpu_custom_call.1} parent=11 // pred_fallthru
          _
        // Predicated region
        $region29: #{tpu_custom_call.1} parent=11 // pred_check
          %p300 = pneg %p219
        $region30: #{tpu_custom_call.1} parent=11 // pred_check_branch
          %302 = sbr.rel (%p300) target = $region32
        $region31: #{tpu_custom_call.1} parent=11 // pred_region
          _
        $region32: #{tpu_custom_call.1} parent=11 // pred_fallthru
          _
      $region12: #{tpu_custom_call.1} parent=5 // pred_fallthru
        _
      %p303 = scmp.lt.s32.totalorder %s22, 2
      // Predicated region
      $region33: #{tpu_custom_call.1} parent=5 // pred_check
        %p304 = pneg %p303
      $region34: #{tpu_custom_call.1} parent=5 // pred_check_branch
        %306 = sbr.rel (%p304) target = $region36
      $region35: #{tpu_custom_call.1} parent=5 // pred_region
        // Predicated region
        $region37: #{tpu_custom_call.1} parent=35 // pred_check
          %p307 = pneg %p54
        $region38: #{tpu_custom_call.1} parent=35 // pred_check_branch
          %309 = sbr.rel (%p307) target = $region40
        $region39: #{tpu_custom_call.1} parent=35 // pred_region
          %p310 = scmp.lt.s32.totalorder %s29, 1
          %s311 = scalar_select %p310, %s29, 1
          %s312 = smul.addr %s311, 8
          %s313 = scalar_lea.vmem %s0, %s312
        $region40: #{tpu_custom_call.1} parent=35 // pred_fallthru
          _
        // Predicated region
        $region41: #{tpu_custom_call.1} parent=35 // pred_check
          %p314 = pneg %p82
        $region42: #{tpu_custom_call.1} parent=35 // pred_check_branch
          %316 = sbr.rel (%p314) target = $region44
        $region43: #{tpu_custom_call.1} parent=35 // pred_region
          %s317 = smul.u32 16, %s30
          %p318 = scmp.lt.s32.totalorder %s29, 1
          %s319 = scalar_select %p318, %s29, 1
          %p320 = scmp.lt.s32.totalorder %s317, 15
          %s321 = scalar_select %p320, %s317, 15
          %s322 = smul.addr %s319, 16
          %s323 = sadd.s32 %s321, %s322
          %s324 = smul.addr %s323, 8
          %s325 = scalar_lea.vmem %s1, %s324
          %s326 = smul.u32 16, %s30
        $region44: #{tpu_custom_call.1} parent=35 // pred_fallthru
          _
        // Predicated region
        $region45: #{tpu_custom_call.1} parent=35 // pred_check
          %p327 = pneg %p108
        $region46: #{tpu_custom_call.1} parent=35 // pred_check_branch
          %329 = sbr.rel (%p327) target = $region48
        $region47: #{tpu_custom_call.1} parent=35 // pred_region
          %p330 = scmp.lt.s32.totalorder %s29, 1
          %s331 = scalar_select %p330, %s29, 1
          %s332 = smul.addr %s331, 4
          %s333 = scalar_lea.vmem %s2, %s332
        $region48: #{tpu_custom_call.1} parent=35 // pred_fallthru
          _
      $region36: #{tpu_custom_call.1} parent=5 // pred_fallthru
        _
      %p334 = scmp.le.s32.totalorder 1, %s22
      %p335 = scmp.lt.s32.totalorder %s22, 3
      %p336 = pnand %p334, %p335
      %p337 = pneg %p336
      // Predicated region
      $region49: #{tpu_custom_call.1} parent=5 // pred_check
        _
      $region50: #{tpu_custom_call.1} parent=5 // pred_check_branch
        %339 = sbr.rel (%p336) target = $region52
      $region51: #{tpu_custom_call.1} parent=5 // pred_region
        %s340 = ssub.s32 %s22, 1
        %p341 = scmp.lt.s32.totalorder %s31, 1
        %s342 = scalar_select %p341, %s31, 1
        %s343 = smul.addr %s342, 8
        %s344 = scalar_lea.vmem %s0, %s343
        %p345 = pneg %p60
        %p346 = pneg %p57
        %s347 = smul.u32 16, %s32
        %p348 = scmp.lt.s32.totalorder %s31, 1
        %s349 = scalar_select %p348, %s31, 1
        %p350 = scmp.lt.s32.totalorder %s347, 15
        %s351 = scalar_select %p350, %s347, 15
        %s352 = smul.addr %s349, 16
        %s353 = sadd.s32 %s351, %s352
        %s354 = smul.addr %s353, 8
        %s355 = scalar_lea.vmem %s1, %s354
        %p356 = pneg %p88
        %p357 = pneg %p85
        %p358 = scmp.lt.s32.totalorder %s31, 1
        %s359 = scalar_select %p358, %s31, 1
        %s360 = smul.addr %s359, 4
        %s361 = scalar_lea.vmem %s2, %s360
        %p362 = pneg %p114
        %p363 = pneg %p111
        %p364 = pneg %p135
        %p365 = pneg %p132
        %p366 = pneg %p156
        %p367 = pneg %p153
        %p368 = pneg %p177
        %p369 = pneg %p174
        %p370 = pneg %p198
        %p371 = pneg %p195
        %p372 = pneg %p219
        %p373 = pneg %p216
        %p374 = pneg %p245
        %p375 = pneg %p242
        %s376 = sand.u32 %s232, 1
        %s377 = scalar_lea.sflag [#allocation5], %s376
        %s378 = sand.u32 %s232, 1
        %s379 = smul.addr %s378, 8
        %s380 = scalar_lea.vmem [#allocation4], %s379
        %p381 = pneg %p273
        %p382 = pneg %p270
        %s383 = sand.u32 %s260, 1
        %s384 = scalar_lea.sflag [#allocation7], %s383
        %s385 = sand.u32 %s260, 1
        %s386 = smul.addr %s385, 8
        %s387 = scalar_lea.vmem [#allocation6], %s386
        %p388 = scmp.lt.s32.totalorder %s31, 1
        %s389 = scalar_select %p388, %s31, 1
        %s390 = smul.addr %s389, 8
        %s391 = scalar_lea.vmem %s0, %s390
        %s392 = smul.u32 16, %s32
        %p393 = scmp.lt.s32.totalorder %s31, 1
        %s394 = scalar_select %p393, %s31, 1
        %p395 = scmp.lt.s32.totalorder %s392, 15
        %s396 = scalar_select %p395, %s392, 15
        %s397 = smul.addr %s394, 16
        %s398 = sadd.s32 %s396, %s397
        %s399 = smul.addr %s398, 8
        %s400 = scalar_lea.vmem %s1, %s399
        %s401 = smul.u32 16, %s32
        %p402 = scmp.lt.s32.totalorder %s31, 1
        %s403 = scalar_select %p402, %s31, 1
        %s404 = smul.addr %s403, 4
        %s405 = scalar_lea.vmem %s2, %s404
        %p406 = scmp.eq.s32.totalorder %s32, 0
        // Predicated region
        $region53: #{tpu_custom_call.1} parent=51 // pred_check
          %p407 = pneg %p406
        $region54: #{tpu_custom_call.1} parent=51 // pred_check_branch
          %409 = sbr.rel (%p407) target = $region56
        $region55: #{tpu_custom_call.1} parent=51 // pred_region
          %vm410 = vcmask 261120
          %411 = vst.msk [vmem:[#allocation2] sm:$0xff] %vm410, 0.0
          %vm412 = vcmask 7168
          %413 = vst.msk [vmem:[#allocation3] sm:$0xff] %vm412, 0.0
        $region56: #{tpu_custom_call.1} parent=51 // pred_fallthru
          _
        %v414 = vld [vmem:[%s400] sm:$0xff]
        %v415 = vld [vmem:[%s400 + $0x8] sm:$0xff]
        %v416 = vld [vmem:[%s400 + $0x10] sm:$0xff]
        %v417 = vld [vmem:[%s400 + $0x18] sm:$0xff]
        %v418 = vld [vmem:[%s400 + $0x20] sm:$0xff]
        %v419 = vld [vmem:[%s400 + $0x28] sm:$0xff]
        %v420 = vld [vmem:[%s400 + $0x30] sm:$0xff]
        %v421 = vld [vmem:[%s400 + $0x38] sm:$0xff]
        %v422 = vld [vmem:[%s400 + $0x40] sm:$0xff]
        %v423 = vld [vmem:[%s400 + $0x48] sm:$0xff]
        %v424 = vld [vmem:[%s400 + $0x50] sm:$0xff]
        %v425 = vld [vmem:[%s400 + $0x58] sm:$0xff]
        %v426 = vld [vmem:[%s400 + $0x60] sm:$0xff]
        %v427 = vld [vmem:[%s400 + $0x68] sm:$0xff]
        %v428 = vld [vmem:[%s400 + $0x70] sm:$0xff]
        %v429 = vld [vmem:[%s400 + $0x78] sm:$0xff]
        %v430 = vld [vmem:[%s3] sm:$0x1]
        %v431 = vld [vmem:[%s4] sm:$0x1]
        %vm432 = vcmask 261120
        %v433 = vsel %vm432, %v414, 0.0
        %434 = vadd.xlane.f32.xlu0 %v433
        %v435 = vpop.xlane.xlu0 %434
        %v436 = vsel %vm432, %v415, 0.0
        %437 = vadd.xlane.f32.xlu0 %v436
        %v438 = vpop.xlane.xlu0 %437
        %v439 = vsel %vm432, %v416, 0.0
        %440 = vadd.xlane.f32.xlu0 %v439
        %v441 = vpop.xlane.xlu0 %440
        %v442 = vsel %vm432, %v417, 0.0
        %443 = vadd.xlane.f32.xlu0 %v442
        %v444 = vpop.xlane.xlu0 %443
        %v445 = vsel %vm432, %v418, 0.0
        %446 = vadd.xlane.f32.xlu0 %v445
        %v447 = vpop.xlane.xlu0 %446
        %v448 = vsel %vm432, %v419, 0.0
        %449 = vadd.xlane.f32.xlu0 %v448
        %v450 = vpop.xlane.xlu0 %449
        %v451 = vsel %vm432, %v420, 0.0
        %452 = vadd.xlane.f32.xlu0 %v451
        %v453 = vpop.xlane.xlu0 %452
        %v454 = vsel %vm432, %v421, 0.0
        %455 = vadd.xlane.f32.xlu0 %v454
        %v456 = vpop.xlane.xlu0 %455
        %v457 = vsel %vm432, %v422, 0.0
        %458 = vadd.xlane.f32.xlu0 %v457
        %v459 = vpop.xlane.xlu0 %458
        %v460 = vsel %vm432, %v423, 0.0
        %461 = vadd.xlane.f32.xlu0 %v460
        %v462 = vpop.xlane.xlu0 %461
        %v463 = vsel %vm432, %v424, 0.0
        %464 = vadd.xlane.f32.xlu0 %v463
        %v465 = vpop.xlane.xlu0 %464
        %v466 = vsel %vm432, %v425, 0.0
        %467 = vadd.xlane.f32.xlu0 %v466
        %v468 = vpop.xlane.xlu0 %467
        %v469 = vsel %vm432, %v426, 0.0
        %470 = vadd.xlane.f32.xlu0 %v469
        %v471 = vpop.xlane.xlu0 %470
        %v472 = vsel %vm432, %v427, 0.0
        %473 = vadd.xlane.f32.xlu0 %v472
        %v474 = vpop.xlane.xlu0 %473
        %v475 = vsel %vm432, %v428, 0.0
        %476 = vadd.xlane.f32.xlu0 %v475
        %v477 = vpop.xlane.xlu0 %476
        %v478 = vsel %vm432, %v429, 0.0
        %479 = vadd.xlane.f32.xlu0 %v478
        %v480 = vpop.xlane.xlu0 %479
        %v481 = vrcp.pop 32.0
        %v482 = vmul.f32 32.0, %v481
        %v483 = vsub.f32 1.0, %v482
        %v484 = vmul.f32 %v481, %v483
        %v485 = vadd.f32 %v481, %v484
        %vm486 = vweird.f32 %v481
        %v487 = vsel %vm486, %v481, %v485
        %v488 = vmul.f32 %v435, %v487
        %v489 = vmul.f32 %v438, %v487
        %v490 = vmul.f32 %v441, %v487
        %v491 = vmul.f32 %v444, %v487
        %v492 = vmul.f32 %v447, %v487
        %v493 = vmul.f32 %v450, %v487
        %v494 = vmul.f32 %v453, %v487
        %v495 = vmul.f32 %v456, %v487
        %v496 = vmul.f32 %v459, %v487
        %v497 = vmul.f32 %v462, %v487
        %v498 = vmul.f32 %v465, %v487
        %v499 = vmul.f32 %v468, %v487
        %v500 = vmul.f32 %v471, %v487
        %v501 = vmul.f32 %v474, %v487
        %v502 = vmul.f32 %v477, %v487
        %v503 = vmul.f32 %v480, %v487
        %v504 = vsub.f32 %v414, %v488
        %v505 = vsub.f32 %v415, %v489
        %v506 = vsub.f32 %v416, %v490
        %v507 = vsub.f32 %v417, %v491
        %v508 = vsub.f32 %v418, %v492
        %v509 = vsub.f32 %v419, %v493
        %v510 = vsub.f32 %v420, %v494
        %v511 = vsub.f32 %v421, %v495
        %v512 = vsub.f32 %v422, %v496
        %v513 = vsub.f32 %v423, %v497
        %v514 = vsub.f32 %v424, %v498
        %v515 = vsub.f32 %v425, %v499
        %v516 = vsub.f32 %v426, %v500
        %v517 = vsub.f32 %v427, %v501
        %v518 = vsub.f32 %v428, %v502
        %v519 = vsub.f32 %v429, %v503
        %v520 = vmul.f32 %v504, %v504
        %v521 = vmul.f32 %v505, %v505
        %v522 = vmul.f32 %v506, %v506
        %v523 = vmul.f32 %v507, %v507
        %v524 = vmul.f32 %v508, %v508
        %v525 = vmul.f32 %v509, %v509
        %v526 = vmul.f32 %v510, %v510
        %v527 = vmul.f32 %v511, %v511
        %v528 = vmul.f32 %v512, %v512
        %v529 = vmul.f32 %v513, %v513
        %v530 = vmul.f32 %v514, %v514
        %v531 = vmul.f32 %v515, %v515
        %v532 = vmul.f32 %v516, %v516
        %v533 = vmul.f32 %v517, %v517
        %v534 = vmul.f32 %v518, %v518
        %v535 = vmul.f32 %v519, %v519
        %v536 = vsel %vm432, %v520, 0.0
        %537 = vadd.xlane.f32.xlu0 %v536
        %v538 = vpop.xlane.xlu0 %537
        %v539 = vsel %vm432, %v521, 0.0
        %540 = vadd.xlane.f32.xlu0 %v539
        %v541 = vpop.xlane.xlu0 %540
        %v542 = vsel %vm432, %v522, 0.0
        %543 = vadd.xlane.f32.xlu0 %v542
        %v544 = vpop.xlane.xlu0 %543
        %v545 = vsel %vm432, %v523, 0.0
        %546 = vadd.xlane.f32.xlu0 %v545
        %v547 = vpop.xlane.xlu0 %546
        %v548 = vsel %vm432, %v524, 0.0
        %549 = vadd.xlane.f32.xlu0 %v548
        %v550 = vpop.xlane.xlu0 %549
        %v551 = vsel %vm432, %v525, 0.0
        %552 = vadd.xlane.f32.xlu0 %v551
        %v553 = vpop.xlane.xlu0 %552
        %v554 = vsel %vm432, %v526, 0.0
        %555 = vadd.xlane.f32.xlu0 %v554
        %v556 = vpop.xlane.xlu0 %555
        %v557 = vsel %vm432, %v527, 0.0
        %558 = vadd.xlane.f32.xlu0 %v557
        %v559 = vpop.xlane.xlu0 %558
        %v560 = vsel %vm432, %v528, 0.0
        %561 = vadd.xlane.f32.xlu0 %v560
        %v562 = vpop.xlane.xlu0 %561
        %v563 = vsel %vm432, %v529, 0.0
        %564 = vadd.xlane.f32.xlu0 %v563
        %v565 = vpop.xlane.xlu0 %564
        %v566 = vsel %vm432, %v530, 0.0
        %567 = vadd.xlane.f32.xlu0 %v566
        %v568 = vpop.xlane.xlu0 %567
        %v569 = vsel %vm432, %v531, 0.0
        %570 = vadd.xlane.f32.xlu0 %v569
        %v571 = vpop.xlane.xlu0 %570
        %v572 = vsel %vm432, %v532, 0.0
        %573 = vadd.xlane.f32.xlu0 %v572
        %v574 = vpop.xlane.xlu0 %573
        %v575 = vsel %vm432, %v533, 0.0
        %576 = vadd.xlane.f32.xlu0 %v575
        %v577 = vpop.xlane.xlu0 %576
        %v578 = vsel %vm432, %v534, 0.0
        %579 = vadd.xlane.f32.xlu0 %v578
        %v580 = vpop.xlane.xlu0 %579
        %v581 = vsel %vm432, %v535, 0.0
        %582 = vadd.xlane.f32.xlu0 %v581
        %v583 = vpop.xlane.xlu0 %582
        %v584 = vmul.f32 %v538, %v487
        %v585 = vmul.f32 %v541, %v487
        %v586 = vmul.f32 %v544, %v487
        %v587 = vmul.f32 %v547, %v487
        %v588 = vmul.f32 %v550, %v487
        %v589 = vmul.f32 %v553, %v487
        %v590 = vmul.f32 %v556, %v487
        %v591 = vmul.f32 %v559, %v487
        %v592 = vmul.f32 %v562, %v487
        %v593 = vmul.f32 %v565, %v487
        %v594 = vmul.f32 %v568, %v487
        %v595 = vmul.f32 %v571, %v487
        %v596 = vmul.f32 %v574, %v487
        %v597 = vmul.f32 %v577, %v487
        %v598 = vmul.f32 %v580, %v487
        %v599 = vmul.f32 %v583, %v487
        %v600 = vadd.f32 %v584, 1e-05
        %v601 = vadd.f32 %v585, 1e-05
        %v602 = vadd.f32 %v586, 1e-05
        %v603 = vadd.f32 %v587, 1e-05
        %v604 = vadd.f32 %v588, 1e-05
        %v605 = vadd.f32 %v589, 1e-05
        %v606 = vadd.f32 %v590, 1e-05
        %v607 = vadd.f32 %v591, 1e-05
        %v608 = vadd.f32 %v592, 1e-05
        %v609 = vadd.f32 %v593, 1e-05
        %v610 = vadd.f32 %v594, 1e-05
        %v611 = vadd.f32 %v595, 1e-05
        %v612 = vadd.f32 %v596, 1e-05
        %v613 = vadd.f32 %v597, 1e-05
        %v614 = vadd.f32 %v598, 1e-05
        %v615 = vadd.f32 %v599, 1e-05
        %v616 = vrsqrt.pop %v600
        %v617 = vmul.f32 %v616, %v600
        %v618 = vmul.f32 %v617, %v616
        %v619 = vmul.f32 0.5, %v618
        %v620 = vsub.f32 1.5, %v619
        %v621 = vmul.f32 %v616, %v620
        %vm622 = vweird.f32 %v600
        %vm623 = vweird.f32 %v616
        %vm624 = vmor %vm622, %vm623
        %v625 = vsel %vm624, %v616, %v621
        %v626 = vrsqrt.pop %v601
        %v627 = vmul.f32 %v626, %v601
        %v628 = vmul.f32 %v627, %v626
        %v629 = vmul.f32 0.5, %v628
        %v630 = vsub.f32 1.5, %v629
        %v631 = vmul.f32 %v626, %v630
        %vm632 = vweird.f32 %v601
        %vm633 = vweird.f32 %v626
        %vm634 = vmor %vm632, %vm633
        %v635 = vsel %vm634, %v626, %v631
        %v636 = vrsqrt.pop %v602
        %v637 = vmul.f32 %v636, %v602
        %v638 = vmul.f32 %v637, %v636
        %v639 = vmul.f32 0.5, %v638
        %v640 = vsub.f32 1.5, %v639
        %v641 = vmul.f32 %v636, %v640
        %vm642 = vweird.f32 %v602
        %vm643 = vweird.f32 %v636
        %vm644 = vmor %vm642, %vm643
        %v645 = vsel %vm644, %v636, %v641
        %v646 = vrsqrt.pop %v603
        %v647 = vmul.f32 %v646, %v603
        %v648 = vmul.f32 %v647, %v646
        %v649 = vmul.f32 0.5, %v648
        %v650 = vsub.f32 1.5, %v649
        %v651 = vmul.f32 %v646, %v650
        %vm652 = vweird.f32 %v603
        %vm653 = vweird.f32 %v646
        %vm654 = vmor %vm652, %vm653
        %v655 = vsel %vm654, %v646, %v651
        %v656 = vrsqrt.pop %v604
        %v657 = vmul.f32 %v656, %v604
        %v658 = vmul.f32 %v657, %v656
        %v659 = vmul.f32 0.5, %v658
        %v660 = vsub.f32 1.5, %v659
        %v661 = vmul.f32 %v656, %v660
        %vm662 = vweird.f32 %v604
        %vm663 = vweird.f32 %v656
        %vm664 = vmor %vm662, %vm663
        %v665 = vsel %vm664, %v656, %v661
        %v666 = vrsqrt.pop %v605
        %v667 = vmul.f32 %v666, %v605
        %v668 = vmul.f32 %v667, %v666
        %v669 = vmul.f32 0.5, %v668
        %v670 = vsub.f32 1.5, %v669
        %v671 = vmul.f32 %v666, %v670
        %vm672 = vweird.f32 %v605
        %vm673 = vweird.f32 %v666
        %vm674 = vmor %vm672, %vm673
        %v675 = vsel %vm674, %v666, %v671
        %v676 = vrsqrt.pop %v606
        %v677 = vmul.f32 %v676, %v606
        %v678 = vmul.f32 %v677, %v676
        %v679 = vmul.f32 0.5, %v678
        %v680 = vsub.f32 1.5, %v679
        %v681 = vmul.f32 %v676, %v680
        %vm682 = vweird.f32 %v606
        %vm683 = vweird.f32 %v676
        %vm684 = vmor %vm682, %vm683
        %v685 = vsel %vm684, %v676, %v681
        %v686 = vrsqrt.pop %v607
        %v687 = vmul.f32 %v686, %v607
        %v688 = vmul.f32 %v687, %v686
        %v689 = vmul.f32 0.5, %v688
        %v690 = vsub.f32 1.5, %v689
        %v691 = vmul.f32 %v686, %v690
        %vm692 = vweird.f32 %v607
        %vm693 = vweird.f32 %v686
        %vm694 = vmor %vm692, %vm693
        %v695 = vsel %vm694, %v686, %v691
        %v696 = vrsqrt.pop %v608
        %v697 = vmul.f32 %v696, %v608
        %v698 = vmul.f32 %v697, %v696
        %v699 = vmul.f32 0.5, %v698
        %v700 = vsub.f32 1.5, %v699
        %v701 = vmul.f32 %v696, %v700
        %vm702 = vweird.f32 %v608
        %vm703 = vweird.f32 %v696
        %vm704 = vmor %vm702, %vm703
        %v705 = vsel %vm704, %v696, %v701
        %v706 = vrsqrt.pop %v609
        %v707 = vmul.f32 %v706, %v609
        %v708 = vmul.f32 %v707, %v706
        %v709 = vmul.f32 0.5, %v708
        %v710 = vsub.f32 1.5, %v709
        %v711 = vmul.f32 %v706, %v710
        %vm712 = vweird.f32 %v609
        %vm713 = vweird.f32 %v706
        %vm714 = vmor %vm712, %vm713
        %v715 = vsel %vm714, %v706, %v711
        %v716 = vrsqrt.pop %v610
        %v717 = vmul.f32 %v716, %v610
        %v718 = vmul.f32 %v717, %v716
        %v719 = vmul.f32 0.5, %v718
        %v720 = vsub.f32 1.5, %v719
        %v721 = vmul.f32 %v716, %v720
        %vm722 = vweird.f32 %v610
        %vm723 = vweird.f32 %v716
        %vm724 = vmor %vm722, %vm723
        %v725 = vsel %vm724, %v716, %v721
        %v726 = vrsqrt.pop %v611
        %v727 = vmul.f32 %v726, %v611
        %v728 = vmul.f32 %v727, %v726
        %v729 = vmul.f32 0.5, %v728
        %v730 = vsub.f32 1.5, %v729
        %v731 = vmul.f32 %v726, %v730
        %vm732 = vweird.f32 %v611
        %vm733 = vweird.f32 %v726
        %vm734 = vmor %vm732, %vm733
        %v735 = vsel %vm734, %v726, %v731
        %v736 = vrsqrt.pop %v612
        %v737 = vmul.f32 %v736, %v612
        %v738 = vmul.f32 %v737, %v736
        %v739 = vmul.f32 0.5, %v738
        %v740 = vsub.f32 1.5, %v739
        %v741 = vmul.f32 %v736, %v740
        %vm742 = vweird.f32 %v612
        %vm743 = vweird.f32 %v736
        %vm744 = vmor %vm742, %vm743
        %v745 = vsel %vm744, %v736, %v741
        %v746 = vrsqrt.pop %v613
        %v747 = vmul.f32 %v746, %v613
        %v748 = vmul.f32 %v747, %v746
        %v749 = vmul.f32 0.5, %v748
        %v750 = vsub.f32 1.5, %v749
        %v751 = vmul.f32 %v746, %v750
        %vm752 = vweird.f32 %v613
        %vm753 = vweird.f32 %v746
        %vm754 = vmor %vm752, %vm753
        %v755 = vsel %vm754, %v746, %v751
        %v756 = vrsqrt.pop %v614
        %v757 = vmul.f32 %v756, %v614
        %v758 = vmul.f32 %v757, %v756
        %v759 = vmul.f32 0.5, %v758
        %v760 = vsub.f32 1.5, %v759
        %v761 = vmul.f32 %v756, %v760
        %vm762 = vweird.f32 %v614
        %vm763 = vweird.f32 %v756
        %vm764 = vmor %vm762, %vm763
        %v765 = vsel %vm764, %v756, %v761
        %v766 = vrsqrt.pop %v615
        %v767 = vmul.f32 %v766, %v615
        %v768 = vmul.f32 %v767, %v766
        %v769 = vmul.f32 0.5, %v768
        %v770 = vsub.f32 1.5, %v769
        %v771 = vmul.f32 %v766, %v770
        %vm772 = vweird.f32 %v615
        %vm773 = vweird.f32 %v766
        %vm774 = vmor %vm772, %vm773
        %v775 = vsel %vm774, %v766, %v771
        %v776 = vmul.f32 %v504, %v625
        %v777 = vmul.f32 %v505, %v635
        %v778 = vmul.f32 %v506, %v645
        %v779 = vmul.f32 %v507, %v655
        %v780 = vmul.f32 %v508, %v665
        %v781 = vmul.f32 %v509, %v675
        %v782 = vmul.f32 %v510, %v685
        %v783 = vmul.f32 %v511, %v695
        %v784 = vmul.f32 %v512, %v705
        %v785 = vmul.f32 %v513, %v715
        %v786 = vmul.f32 %v514, %v725
        %v787 = vmul.f32 %v515, %v735
        %v788 = vmul.f32 %v516, %v745
        %v789 = vmul.f32 %v517, %v755
        %v790 = vmul.f32 %v518, %v765
        %v791 = vmul.f32 %v519, %v775
        %v793 = vperm.slane %v430, 0
        %v795 = vmul.f32 %v776, %v793
        %v796 = vmul.f32 %v777, %v793
        %v797 = vmul.f32 %v778, %v793
        %v798 = vmul.f32 %v779, %v793
        %v799 = vmul.f32 %v780, %v793
        %v800 = vmul.f32 %v781, %v793
        %v801 = vmul.f32 %v782, %v793
        %v802 = vmul.f32 %v783, %v793
        %v803 = vmul.f32 %v784, %v793
        %v804 = vmul.f32 %v785, %v793
        %v805 = vmul.f32 %v786, %v793
        %v806 = vmul.f32 %v787, %v793
        %v807 = vmul.f32 %v788, %v793
        %v808 = vmul.f32 %v789, %v793
        %v809 = vmul.f32 %v790, %v793
        %v810 = vmul.f32 %v791, %v793
        %v812 = vperm.slane %v431, 0
        %v814 = vadd.f32 %v795, %v812
        %v815 = vadd.f32 %v796, %v812
        %v816 = vadd.f32 %v797, %v812
        %v817 = vadd.f32 %v798, %v812
        %v818 = vadd.f32 %v799, %v812
        %v819 = vadd.f32 %v800, %v812
        %v820 = vadd.f32 %v801, %v812
        %v821 = vadd.f32 %v802, %v812
        %v822 = vadd.f32 %v803, %v812
        %v823 = vadd.f32 %v804, %v812
        %v824 = vadd.f32 %v805, %v812
        %v825 = vadd.f32 %v806, %v812
        %v826 = vadd.f32 %v807, %v812
        %v827 = vadd.f32 %v808, %v812
        %v828 = vadd.f32 %v809, %v812
        %v829 = vadd.f32 %v810, %v812
        %v830 = vpack.c.bf16 %v815, %v814
        %v831 = vpack.c.bf16 %v817, %v816
        %v832 = vpack.c.bf16 %v819, %v818
        %v833 = vpack.c.bf16 %v821, %v820
        %v834 = vpack.c.bf16 %v823, %v822
        %v835 = vpack.c.bf16 %v825, %v824
        %v836 = vpack.c.bf16 %v827, %v826
        %v837 = vpack.c.bf16 %v829, %v828
        %v838 = vld [vmem:[%s405] sm:$0xf]
        %v840 = vsel %vm432, %v838, 0
        %v843 = vsel %vm432, %v830, 0
        %v846 = vsel %vm432, %v831, 0
        %v849 = vsel %vm432, %v832, 0
        %v852 = vsel %vm432, %v833, 0
        %v855 = vsel %vm432, %v834, 0
        %v858 = vsel %vm432, %v835, 0
        %v861 = vsel %vm432, %v836, 0
        %v864 = vsel %vm432, %v837, 0
        %866 = vmatpush.bf16.xpose.msra.mxu0 %v864
        %867 = vmatpush.bf16.xpose.msra.mxu0 %v861
        %868 = vmatpush.bf16.xpose.msra.mxu0 %v858
        %869 = vmatpush.bf16.xpose.msra.mxu0 %v855
        %870 = vmatpush.bf16.xpose.msra.mxu0 %v852
        %871 = vmatpush.bf16.xpose.msra.mxu0 %v849
        %872 = vmatpush.bf16.xpose.msra.mxu0 %v846
        %873 = vmatpush.bf16.xpose.msra.mxu0 %v843
        %874 = vmatmul.bf16.gmra.mxu0 %v840
        %v875 = vpop.f32.mrf.mxu0
        %v876 = vadd.f32 0.0, %v875
        %v877 = vpop.f32.mrf.mxu0
        %878 = vdwg.mxu0
        %v879 = vrot.slane %v876, 4
        %v880 = vmax.f32 %v876, %v879
        %v881 = vrot.slane %v880, 2
        %v882 = vmax.f32 %v880, %v881
        %v883 = vrot.slane %v882, 1
        %v884 = vmax.f32 %v882, %v883
        %v885 = vsub.f32 %v876, %v884
        %v886 = vmul.f32 %v885, 1.442695
        %v887 = vpow.pop %v886
        %v888 = vrot.slane %v887, 4
        %v889 = vadd.f32 %v887, %v888
        %v890 = vrot.slane %v889, 2
        %v891 = vadd.f32 %v889, %v890
        %v892 = vrot.slane %v891, 1
        %v893 = vadd.f32 %v891, %v892
        %v894 = vrcp.pop %v893
        %v895 = vmul.f32 %v887, %v894
        %s896 = smul.u32 %s32, 128
        %v897 = vlaneseq
        %v898 = vand.u32 %v897, 127
        %v899 = vstv %s896
        %v900 = vadd.s32 %v899, %v898
        %vm901 = vcmp.lt.s32.totalorder %v900, 64
        %v902 = vsel %vm901, 1, 0
        %vm903 = vcmp.eq.s32.totalorder %v902, 1
        %v904 = vsel %vm903, %v895, 0.0
        %905 = vst [vmem:[%s387] sm:$0xff] %v904
        %v906 = vld [vmem:[#allocation2] sm:$0xff]
        %v907 = vpack.c.bf16 %v904, %v904
        %908 = vmatpush.bf16.msra.mxu0 %v837
        %909 = vmatpush.bf16.msra.mxu0 %v836
        %910 = vmatpush.bf16.msra.mxu0 %v835
        %911 = vmatpush.bf16.msra.mxu0 %v834
        %912 = vmatpush.bf16.msra.mxu0 %v833
        %913 = vmatpush.bf16.msra.mxu0 %v832
        %914 = vmatpush.bf16.msra.mxu0 %v831
        %915 = vmatpush.bf16.msra.mxu0 %v830
        %916 = vmatmul.bf16.gmra.mxu0 %v907
        %v917 = vpop.f32.mrf.mxu0
        %v918 = vadd.f32 0.0, %v917
        %v919 = vpop.f32.mrf.mxu0
        %920 = vdwg.mxu0
        %v921 = vadd.f32 %v906, %v918
        %922 = vst.msk [vmem:[#allocation2] sm:$0xff] %vm432, %v921
        %v923 = vld [vmem:[#allocation3] sm:$0xff]
        %924 = vadd.xlane.f32.xlu0 %v904
        %v925 = vpop.xlane.xlu0 %924
        %v926 = vadd.f32 %v923, %v925
        %vm927 = vcmask 7168
        %928 = vst.msk [vmem:[#allocation3] sm:$0xff] %vm927, %v926
        // Predicated region
        $region57: #{tpu_custom_call.1} parent=51 // pred_check
          %p929 = pneg %p406
        $region58: #{tpu_custom_call.1} parent=51 // pred_check_branch
          %931 = sbr.rel (%p929) target = $region60
        $region59: #{tpu_custom_call.1} parent=51 // pred_region
          %v932 = vld [vmem:[%s391] sm:$0xff]
          %v933 = vld [vmem:[#allocation3] sm:$0xff]
          %v934 = vadd.f32 %v933, 1e-08
          %v935 = vrcp.pop %v934
          %v936 = vmul.f32 %v934, %v935
          %v937 = vsub.f32 1.0, %v936
          %v938 = vmul.f32 %v935, %v937
          %v939 = vadd.f32 %v935, %v938
          %vm940 = vweird.f32 %v934
          %vm941 = vweird.f32 %v935
          %vm942 = vmor %vm940, %vm941
          %v943 = vsel %vm942, %v935, %v939
          %v944 = vand.u32 2147483647, %v934
          %vm945 = vcmp.eq.f32.partialorder %v944, 8.507059e+37
          %v946 = vand.u32 %v934, 2147483648
          %v947 = vor.u32 1.1754944e-38, %v946
          %v948 = vsel %vm945, %v947, %v943
          %v949 = vmul.f32 1.0, %v948
          %v950 = vld [vmem:[#allocation2] sm:$0xff]
          %952 = vset.pattern.permute.xlu0 0
          %953 = vperm.xlu0 %952, %v949
          %v954 = vpop.permute.xlu0 %953
          %v956 = vmul.f32 %v950, %v954
          %v957 = vld [vmem:[%s5] sm:$0xff]
          %v958 = vld [vmem:[%s5 + $0x8] sm:$0xff]
          %v959 = vld [vmem:[%s5 + $0x10] sm:$0xff]
          %v960 = vld [vmem:[%s5 + $0x18] sm:$0xff]
          %v962 = vsel %vm432, %v956, 0
          %964 = vmatpush.msra.mxu0 0.0
          %965 = vmatpush.msra.mxu0 0.0
          %966 = vmatpush.msra.mxu0 0.0
          %967 = vmatpush.msra.mxu0 0.0
          %968 = vmatpush.msra.mxu0 0.0
          %969 = vmatpush.msra.mxu0 0.0
          %970 = vmatpush.msra.mxu0 0.0
          %971 = vmatpush.msra.mxu0 0.0
          %972 = vmatpush.msra.mxu0 0.0
          %973 = vmatpush.msra.mxu0 0.0
          %974 = vmatpush.msra.mxu0 0.0
          %975 = vmatpush.msra.mxu0 0.0
          %976 = vmatpush.msra.mxu0 %v960
          %977 = vmatpush.msra.mxu0 %v959
          %978 = vmatpush.msra.mxu0 %v958
          %979 = vmatpush.msra.mxu0 %v957
          %980 = vmatmul.f32.gmra.mxu0 %v962
          %v981 = vpop.f32.mrf.mxu0
          %v982 = vadd.f32 0.0, %v981
          %983 = vdwg.mxu0
          %v984 = vadd.f32 %v932, %v982
          %v986 = vsel %vm432, %v984, 0
          %988 = vmatpush.xpose.msra.mxu0 0.0
          %989 = vmatpush.xpose.msra.mxu0 0.0
          %990 = vmatpush.xpose.msra.mxu0 0.0
          %991 = vmatpush.xpose.msra.mxu0 0.0
          %992 = vmatpush.xpose.msra.mxu0 0.0
          %993 = vmatpush.xpose.msra.mxu0 0.0
          %994 = vmatpush.xpose.msra.mxu0 0.0
          %995 = vmatpush.xpose.msra.mxu0 0.0
          %996 = vmatpush.xpose.msra.mxu0 0.0
          %997 = vmatpush.xpose.msra.mxu0 0.0
          %998 = vmatpush.xpose.msra.mxu0 0.0
          %999 = vmatpush.xpose.msra.mxu0 0.0
          %1000 = vmatpush.xpose.msra.mxu0 0.0
          %1001 = vmatpush.xpose.msra.mxu0 0.0
          %1002 = vmatpush.xpose.msra.mxu0 0.0
          %1003 = vmatpush.xpose.msra.mxu0 %v986
          %1004 = vmatmul.f32.gmra.mxu0 %v986
          %v1005 = vpop.f32.mrf.mxu0
          %v1006 = vadd.f32 0.0, %v1005
          %1007 = vdwg.mxu0
          %v1008 = vmul.f32 %v1006, 0.17677669
          %vm1009 = vcmask 64512
          %v1010 = vsel %vm1009, %v1008, -inf
          %1011 = vmax.xlane.f32.xlu0 %v1010
          %v1012 = vpop.xlane.xlu0 %1011
          %v1013 = vsub.f32 %v1008, %v1012
          %v1014 = vmul.f32 %v1013, 1.442695
          %v1015 = vpow.pop %v1014
          %v1016 = vsel %vm1009, %v1015, 0.0
          %1017 = vadd.xlane.f32.xlu0 %v1016
          %v1018 = vpop.xlane.xlu0 %1017
          %v1019 = vrcp.pop %v1018
          %v1020 = vmul.f32 %v1018, %v1019
          %v1021 = vsub.f32 1.0, %v1020
          %v1022 = vmul.f32 %v1019, %v1021
          %v1023 = vadd.f32 %v1019, %v1022
          %vm1024 = vweird.f32 %v1018
          %vm1025 = vweird.f32 %v1019
          %vm1026 = vmor %vm1024, %vm1025
          %v1027 = vsel %vm1026, %v1019, %v1023
          %v1028 = vand.u32 2147483647, %v1018
          %vm1029 = vcmp.eq.f32.partialorder %v1028, 8.507059e+37
          %v1030 = vand.u32 %v1018, 2147483648
          %v1031 = vor.u32 1.1754944e-38, %v1030
          %v1032 = vsel %vm1029, %v1031, %v1027
          %v1033 = vmul.f32 %v1015, %v1032
          %v1035 = vsel %vm1009, %v1033, 0
          %1037 = vmatpush.msra.mxu0 0.0
          %1038 = vmatpush.msra.mxu0 0.0
          %1039 = vmatpush.msra.mxu0 0.0
          %1040 = vmatpush.msra.mxu0 0.0
          %1041 = vmatpush.msra.mxu0 0.0
          %1042 = vmatpush.msra.mxu0 0.0
          %1043 = vmatpush.msra.mxu0 0.0
          %1044 = vmatpush.msra.mxu0 0.0
          %1045 = vmatpush.msra.mxu0 0.0
          %1046 = vmatpush.msra.mxu0 0.0
          %1047 = vmatpush.msra.mxu0 0.0
          %1048 = vmatpush.msra.mxu0 0.0
          %1049 = vmatpush.msra.mxu0 0.0
          %1050 = vmatpush.msra.mxu0 0.0
          %1051 = vmatpush.msra.mxu0 0.0
          %1052 = vmatpush.msra.mxu0 %v984
          %1053 = vmatmul.f32.gmra.mxu0 %v1035
          %v1054 = vpop.f32.mrf.mxu0
          %v1055 = vadd.f32 0.0, %v1054
          %1056 = vdwg.mxu0
          %v1057 = vld [vmem:[%s6] sm:$0xff]
          %v1058 = vld [vmem:[%s6 + $0x8] sm:$0xff]
          %v1059 = vld [vmem:[%s6 + $0x10] sm:$0xff]
          %v1060 = vld [vmem:[%s6 + $0x18] sm:$0xff]
          %v1061 = vld [vmem:[%s7] sm:$0x1]
          %v1063 = vperm.slane %v1061, 0
          %v1066 = vsel %vm432, %v1055, 0
          %1068 = vmatpush.msra.mxu0 0.0
          %1069 = vmatpush.msra.mxu0 0.0
          %1070 = vmatpush.msra.mxu0 0.0
          %1071 = vmatpush.msra.mxu0 0.0
          %1072 = vmatpush.msra.mxu0 0.0
          %1073 = vmatpush.msra.mxu0 0.0
          %1074 = vmatpush.msra.mxu0 0.0
          %1075 = vmatpush.msra.mxu0 0.0
          %1076 = vmatpush.msra.mxu0 0.0
          %1077 = vmatpush.msra.mxu0 0.0
          %1078 = vmatpush.msra.mxu0 0.0
          %1079 = vmatpush.msra.mxu0 0.0
          %1080 = vmatpush.msra.mxu0 %v1060
          %1081 = vmatpush.msra.mxu0 %v1059
          %1082 = vmatpush.msra.mxu0 %v1058
          %1083 = vmatpush.msra.mxu0 %v1057
          %1084 = vmatmul.f32.gmra.mxu0 %v1066
          %v1085 = vpop.f32.mrf.mxu0
          %v1086 = vadd.f32 %v1063, %v1085
          %1087 = vdwg.mxu0
          %v1088 = vmax.f32 %v1086, 0.0
          %v1089 = vadd.f32 %v984, %v1088
          %1090 = vst.msk [vmem:[%s380] sm:$0xff] %vm432, %v1089
        $region60: #{tpu_custom_call.1} parent=51 // pred_fallthru
          _
        %s1091 = sand.u32 %s232, 1
        %s1092 = scalar_lea.sflag [#allocation5], %s1091
        %s1093 = sand.u32 %s232, 1
        %s1094 = smul.addr %s1093, 8
        %s1095 = scalar_lea.vmem [#allocation4], %s1094
        %s1096 = sand.u32 %s260, 1
        %s1097 = scalar_lea.sflag [#allocation7], %s1096
        %s1098 = sand.u32 %s260, 1
        %s1099 = smul.addr %s1098, 8
        %s1100 = scalar_lea.vmem [#allocation6], %s1099
        // Predicated region
        $region61: #{tpu_custom_call.1} parent=51 // pred_check
          %p1101 = pneg %p242
        $region62: #{tpu_custom_call.1} parent=51 // pred_check_branch
          %1103 = sbr.rel (%p1101) target = $region64
        $region63: #{tpu_custom_call.1} parent=51 // pred_region
          %1105 = vsyncadd %s1092, 0
          %s1106 = smul.addr %s31, 8
          %s1107 = scalar_lea.hbm %s8, %s1106
          %s1109 = sshll.u32 %s1095, 4
          %s1110 = int_to_ptr.vmem [resolvable:$true] %s1109
          %s1111 = sshll.u32 %s1107, 4
          %s1112 = int_to_ptr.hbm [resolvable:$true] %s1111
          %1114 = dma.vmem_to_hbm [thread:$0]  %s1110, 128, %s1112, %s1092
        $region64: #{tpu_custom_call.1} parent=51 // pred_fallthru
          _
        // Predicated region
        $region65: #{tpu_custom_call.1} parent=51 // pred_check
          %p1115 = pneg %p270
        $region66: #{tpu_custom_call.1} parent=51 // pred_check_branch
          %1117 = sbr.rel (%p1115) target = $region68
        $region67: #{tpu_custom_call.1} parent=51 // pred_region
          %1119 = vsyncadd %s1097, 0
          %s1120 = sadd.s32 %s32, %s31
          %s1121 = smul.addr %s1120, 8
          %s1122 = scalar_lea.hbm %s9, %s1121
          %s1124 = sshll.u32 %s1100, 4
          %s1125 = int_to_ptr.vmem [resolvable:$true] %s1124
          %s1126 = sshll.u32 %s1122, 4
          %s1127 = int_to_ptr.hbm [resolvable:$true] %s1126
          %1129 = dma.vmem_to_hbm [thread:$0]  %s1125, 128, %s1127, %s1097
        $region68: #{tpu_custom_call.1} parent=51 // pred_fallthru
          _
      $region52: #{tpu_custom_call.1} parent=5 // pred_fallthru
        _
      %p1130 = scmp.le.s32.totalorder 2, %s22
      // Predicated region
      $region69: #{tpu_custom_call.1} parent=5 // pred_check
        %p1131 = pneg %p1130
      $region70: #{tpu_custom_call.1} parent=5 // pred_check_branch
        %1133 = sbr.rel (%p1131) target = $region72
      $region71: #{tpu_custom_call.1} parent=5 // pred_region
        %s1134 = ssub.s32 %s22, 2
        // Predicated region
        $region73: #{tpu_custom_call.1} parent=71 // pred_check
          %p1135 = pneg %p248
        $region74: #{tpu_custom_call.1} parent=71 // pred_check_branch
          %1137 = sbr.rel (%p1135) target = $region76
        $region75: #{tpu_custom_call.1} parent=71 // pred_region
          %s1138 = sand.u32 %s233, 1
          %s1139 = scalar_lea.sflag [#allocation5], %s1138
          %s1140 = sand.u32 %s233, 1
          %s1141 = smul.addr %s1140, 8
          %s1142 = scalar_lea.vmem [#allocation4], %s1141
          %1144 = dma.done %s1139, 128
        $region76: #{tpu_custom_call.1} parent=71 // pred_fallthru
          _
        // Predicated region
        $region77: #{tpu_custom_call.1} parent=71 // pred_check
          %p1145 = pneg %p276
        $region78: #{tpu_custom_call.1} parent=71 // pred_check_branch
          %1147 = sbr.rel (%p1145) target = $region80
        $region79: #{tpu_custom_call.1} parent=71 // pred_region
          %s1148 = sand.u32 %s261, 1
          %s1149 = scalar_lea.sflag [#allocation7], %s1148
          %s1150 = sand.u32 %s261, 1
          %s1151 = smul.addr %s1150, 8
          %s1152 = scalar_lea.vmem [#allocation6], %s1151
          %1154 = dma.done %s1149, 128
        $region80: #{tpu_custom_call.1} parent=71 // pred_fallthru
          _
      $region72: #{tpu_custom_call.1} parent=5 // pred_fallthru
        _
    $region6: #{tpu_custom_call.1} parent=1 // loop_footer
      %s26 = sadd.s32 1, %s22
    $region7: #{tpu_custom_call.1} parent=1 // loop_footer_branch
      %21 = sbr.rel target = $region3
    $region8: #{tpu_custom_call.1} parent=1 // loop_exit
      _
    %1155 = vsyncpa [#allocation5], 1
    %s1156 = scalar_lea.sflag [#allocation5], 1
    %1157 = vsyncpa %s1156, 1
    %1158 = vsyncpa [#allocation7], 1
    %s1159 = scalar_lea.sflag [#allocation7], 1
    %1160 = vsyncpa %s1159, 1

</llo_original>
